<compile_context>
chip_gen: v5e
topology: v5e:2x2
jax: 0.10.0
libtpu: 0.0.40
codegen_flags: <defaults>
</compile_context>

<pallas_src>
import jax
import jax.numpy as jnp
from jax.experimental import pallas as pl
from jax.experimental.pallas import tpu as pltpu


def _fold_lane_groups(v, group, num_groups):
    """Sum `num_groups` contiguous lane-groups of width `group` along the last
    axis; the result is replicated into every group (XLU roll-adds, lanes stay
    dense — no unpack reshape)."""
    if num_groups == 1:
        return v
    width = group * num_groups
    axis = v.ndim - 1
    if num_groups & (num_groups - 1) == 0:           # power of two: doubling
        s = group
        while s < width:
            v = v + pltpu.roll(v, shift=s, axis=axis)
            s *= 2
        return v
    acc = v
    for k in range(1, num_groups):
        acc = acc + pltpu.roll(v, shift=k * group, axis=axis)
    return acc


def _make_fused_kernel(block_dims, B, H, W, wc_pad):
    """Fused n-block kernel; block_dims = ((cin, cout), ...) are static."""
    n_blocks = len(block_dims)

    def kernel(x_ref, dw_ref, pw_ref, gb_ref, out_ref,
               pad_ref, left_ref, right_ref):
        # ---- halo init: zero ONLY the two halo rows (vertical zero pad) -----
        # Rows 1..H are overwritten by x below; lanes beyond the active width
        # are never read (all reads slice 0:wci), so no tail-zeroing needed.
        zrow = jnp.zeros((B, 1, wc_pad), jnp.float32)
        pad_ref[:, 0:1, :] = zrow
        pad_ref[:, H + 1:H + 2, :] = zrow
        wc0 = W * block_dims[0][0]
        pad_ref[:, 1:H + 1, 0:wc0] = x_ref[...]

        for blk in range(n_blocks):
            cin, cout = block_dims[blk]
            wci = W * cin
            wco = W * cout

            dw = dw_ref[blk][:, :, 0:wci]   # (3,3,wci) lane-packed, edge-masked

            # ---- hoisted lane rolls: 2 XLU rolls per block (was 6) ----------
            center_all = pad_ref[:, :, 0:wci]                       # (B, H+2, wci)
            left_ref[:, :, 0:wci] = pltpu.roll(center_all, shift=cin, axis=2)        # col w-1
            right_ref[:, :, 0:wci] = pltpu.roll(center_all, shift=wci - cin, axis=2)  # col w+1

            # ---- depthwise 3x3: 3 row-shifted reads of center/left/right ----
            acc = None
            for ky in range(3):
                t = (left_ref[:, ky:ky + H, 0:wci] * dw[ky:ky + 1, 0:1, :]
                     + pad_ref[:, ky:ky + H, 0:wci] * dw[ky:ky + 1, 1:2, :]
                     + right_ref[:, ky:ky + H, 0:wci] * dw[ky:ky + 1, 2:3, :])
                acc = t if acc is None else acc + t                 # no zeros init

            # ---- pointwise 1x1: block-diagonal MXU matmul, bf16 in / f32 acc -
            # TODO(synk): for production C (W*cin >> one MXU tile) replace the
            # kron(I_W, pw) matmul with a per-w dot_general after a one-time
            # lane->sublane repack (W^2 weight blow-up / Wx wasted FLOPs).
            acc2d = acc.reshape(B * H, wci)
            pw = pw_ref[blk][0:wci, 0:wco]                          # bf16
            y = jnp.dot(acc2d.astype(jnp.bfloat16), pw,
                        preferred_element_type=jnp.float32)         # (B*H, wco)

            # ---- BatchNorm (batch stats) folded to scale/shift + ReLU --------
            # One-pass E[y], E[y^2] stats (perf); see reference for two-pass.
            inv_n = 1.0 / float(B * H * W)
            ssum = jnp.sum(y, axis=0, keepdims=True)                # (1, wco)
            ssq = jnp.sum(y * y, axis=0, keepdims=True)
            ssum = _fold_lane_groups(ssum, cout, W)                 # per-channel, replicated
            ssq = _fold_lane_groups(ssq, cout, W)
            mean = ssum * inv_n
            var = ssq * inv_n - mean * mean                         # biased variance
            gamma = gb_ref[blk][0:1, 0:wco]
            beta = gb_ref[blk][1:2, 0:wco]
            scale = gamma * jax.lax.rsqrt(var + 1e-5)               # EUP rsqrt
            shift = beta - mean * scale
            y = jnp.maximum(y * scale + shift, 0.0)

            if blk + 1 < n_blocks:
                # Keep the activation VMEM-resident for the next block.
                pad_ref[:, 1:H + 1, 0:wco] = y.reshape(B, H, wco)
            else:
                # TODO(synk): emit bf16 here (and consume bf16 downstream) for
                # production shapes on v5e to halve HBM writeback.
                out_ref[...] = y.astype(out_ref.dtype)              # lane-dense store

    return kernel


def _pack_params(params, W, wci_max, wco_max):
    """Pack ALL block weights into 3 slabs for the lane-dense (w, c) layout.
    Pure layout plumbing, done once in the wrapper (XLA)."""
    n = len(params)
    dw_slab = jnp.zeros((n, 3, 3, wci_max), jnp.float32)
    pw_slab = jnp.zeros((n, wci_max, wco_max), jnp.bfloat16)
    gb_slab = jnp.zeros((n, 2, wco_max), jnp.float32)
    for i, (dw, pw, gamma, beta) in enumerate(params):
        cin = dw.shape[-1]
        cout = pw.shape[-1]
        wci, wco = W * cin, W * cout
        lane = jnp.arange(wci)
        dw_lanes = jnp.tile(dw, (1, 1, W))                           # (3, 3, wci)
        # Fold the horizontal zero-padding into the weights: after the lane
        # roll the wrapped-around garbage sits in the first/last `cin` lanes.
        dw_lanes = dw_lanes.at[:, 0, :].multiply((lane >= cin).astype(dw.dtype))
        dw_lanes = dw_lanes.at[:, 2, :].multiply((lane < (W - 1) * cin).astype(dw.dtype))
        pw_bd = jnp.kron(jnp.eye(W, dtype=pw.dtype), pw).astype(jnp.bfloat16)
        dw_slab = dw_slab.at[i, :, :, 0:wci].set(dw_lanes)
        pw_slab = pw_slab.at[i, 0:wci, 0:wco].set(pw_bd)
        gb_slab = gb_slab.at[i, 0, 0:wco].set(jnp.tile(gamma.reshape(-1), W))
        gb_slab = gb_slab.at[i, 1, 0:wco].set(jnp.tile(beta.reshape(-1), W))
    return dw_slab, pw_slab, gb_slab


def cnn_jepa_predictor(x_nchw, params):
    """Forward pass matching CNNJEPAPredictor: x [B, C, H, W] -> [B, C', H, W]."""
    B, C, H, W = x_nchw.shape
    block_dims = tuple((dw.shape[-1], pw.shape[-1]) for dw, pw, _, _ in params)
    assert block_dims[0][0] == C
    for i in range(1, len(block_dims)):
        assert block_dims[i][0] == block_dims[i - 1][1], "channel chain mismatch"
    for cin, cout in block_dims:
        # Lane-dense rolls / unmasked stores assume W*C multiples of 128.
        assert (W * cin) % 128 == 0 and (W * cout) % 128 == 0, \
            "lane-dense layout requires W*C to be a multiple of 128"
        # kron(I_W, pw) pointwise path gated to a single MXU tile width.
        assert W * cin <= 256 and W * cout <= 256, \
            "block-diagonal pointwise path gated to W*C <= 256 (see TODO)"

    # NCHW -> NHWC -> lane-packed (B, H, W*C): lanes hold (w, c) with c minor.
    x_packed = jnp.transpose(x_nchw, (0, 2, 3, 1)).reshape(B, H, W * C)

    wci_max = max(W * cin for cin, _ in block_dims)
    wco_max = max(W * cout for _, cout in block_dims)
    dw_slab, pw_slab, gb_slab = _pack_params(params, W, wci_max, wco_max)
    cout_last = block_dims[-1][1]

    # Advisory cost estimate (flops as executed, incl. block-diagonal zeros).
    flops = 0
    transcendentals = 0
    bytes_accessed = (x_packed.size * 4 + B * H * W * cout_last * 4
                      + dw_slab.size * 4 + pw_slab.size * 2 + gb_slab.size * 4)
    for cin, cout in block_dims:
        flops += 2 * 9 * B * H * W * cin                       # depthwise MACs
        flops += 2 * (B * H) * (W * cin) * (W * cout)          # block-diag matmul
        transcendentals += W * cout                            # rsqrt lanes

    kernel = _make_fused_kernel(block_dims, B, H, W, wci_max)
    out_packed = pl.pallas_call(
        kernel,
        out_shape=jax.ShapeDtypeStruct((B * H, W * cout_last), jnp.float32),
        in_specs=[pl.BlockSpec(memory_space=pltpu.MemorySpace.VMEM)] * 4,
        out_specs=pl.BlockSpec(memory_space=pltpu.MemorySpace.VMEM),
        scratch_shapes=[pltpu.VMEM((B, H + 2, wci_max), jnp.float32),   # halo'd act
                        pltpu.VMEM((B, H + 2, wci_max), jnp.float32),   # rolled left
                        pltpu.VMEM((B, H + 2, wci_max), jnp.float32)],  # rolled right
        # Well under 64 MiB so the same config compiles on v7x as well.
        compiler_params=pltpu.CompilerParams(vmem_limit_bytes=32 * 1024 * 1024),
        cost_estimate=pl.CostEstimate(flops=int(flops),
                                      transcendentals=int(transcendentals),
                                      bytes_accessed=int(bytes_accessed)),
    )(x_packed, dw_slab, pw_slab, gb_slab)

    # Unpack lanes -> NHWC -> NCHW (cheap wrapper-side layout plumbing).
    return out_packed.reshape(B, H, W, cout_last).transpose(0, 3, 1, 2)


def init_params(key, in_ch, hidden_ch, out_ch, num_blocks=4):
    dims = ([(in_ch, hidden_ch)]
            + [(hidden_ch, hidden_ch)] * (num_blocks - 2)
            + [(hidden_ch, out_ch)])
    params = []
    for cin, cout in dims:
        key, k1, k2, k3, k4 = jax.random.split(key, 5)
        dw = jax.random.normal(k1, (3, 3, cin), jnp.float32) * (1.0 / 3.0)
        pw = jax.random.normal(k2, (cin, cout), jnp.float32) / jnp.sqrt(float(cin))
        gamma = 1.0 + 0.1 * jax.random.normal(k3, (1, cout), jnp.float32)
        beta = 0.1 * jax.random.normal(k4, (1, cout), jnp.float32)
        params.append((dw, pw, gamma, beta))
    return params


# ---------------- pure-JAX reference for correctness checking ----------------

def _reference_block(x_nhwc, dw, pw, gamma, beta):
    cin = x_nhwc.shape[-1]
    dwk = dw.reshape(3, 3, 1, cin)  # HWIO, feature_group_count=cin (depthwise)
    y = jax.lax.conv_general_dilated(
        x_nhwc, dwk, window_strides=(1, 1), padding='SAME',
        dimension_numbers=('NHWC', 'HWIO', 'NHWC'),
        feature_group_count=cin, precision=jax.lax.Precision.HIGHEST)
    y = jnp.einsum('bhwc,cd->bhwd', y, pw, precision=jax.lax.Precision.HIGHEST)
    mean = jnp.mean(y, axis=(0, 1, 2), keepdims=True)
    var = jnp.mean((y - mean) ** 2, axis=(0, 1, 2), keepdims=True)
    y = (y - mean) * jax.lax.rsqrt(var + 1e-5)
    y = y * gamma.reshape(1, 1, 1, -1) + beta.reshape(1, 1, 1, -1)
    return jnp.maximum(y, 0.0)


def predictor_reference(x_nchw, params):
    x = jnp.transpose(x_nchw, (0, 2, 3, 1))
    for dw, pw, gamma, beta in params:
        x = _reference_block(x, dw, pw, gamma, beta)
    return jnp.transpose(x, (0, 3, 1, 2))


if __name__ == "__main__":
    key = jax.random.PRNGKey(0)
    kx, kp = jax.random.split(key)

    # Small shapes consistent with the module (4 blocks, in=out channels).
    # W * C = 128 so every packed activation / store is exactly lane-dense.
    B, C, H, W = 2, 16, 8, 8
    hidden = 16
    x = jax.random.normal(kx, (B, C, H, W), jnp.float32)
    params = init_params(kp, in_ch=C, hidden_ch=hidden, out_ch=C, num_blocks=4)

    fwd = jax.jit(cnn_jepa_predictor)
    out = jax.block_until_ready(fwd(x, params))

    ref = predictor_reference(x, params)
    assert out.shape == (B, C, H, W), out.shape
    max_err = float(jnp.max(jnp.abs(out - ref)))
    # Tolerance covers bf16 MXU operands on the pointwise matmul (f32 accumulate)
    # across 4 BN-normalised blocks; the f32 reference uses HIGHEST precision.
    assert jnp.allclose(out, ref, rtol=5e-2, atol=5e-2), f"max_err={max_err}"

    print("KERNEL_OK")
</pallas_src>

<mosaic_0001>
module attributes {stable_mosaic.version = 11 : i64} {
  func.func @kernel(%arg0: memref<2x8x128xf32, #tpu.memory_space<vmem>>, %arg1: memref<4x3x3x128xf32, #tpu.memory_space<vmem>>, %arg2: memref<4x128x128xbf16, #tpu.memory_space<vmem>>, %arg3: memref<4x2x128xf32, #tpu.memory_space<vmem>>, %arg4: memref<16x128xf32, #tpu.memory_space<vmem>>, %arg5: memref<2x10x128xf32, #tpu.memory_space<vmem>>, %arg6: memref<2x10x128xf32, #tpu.memory_space<vmem>>, %arg7: memref<2x10x128xf32, #tpu.memory_space<vmem>>) attributes {dimension_semantics = [], scalar_prefetch = 0 : i64, scratch_operands = 3 : i64, tpu.core_type = #tpu.core_type<tc>} {
    %cst = arith.constant 0.000000e+00 : f32
    %0 = vector.broadcast %cst : f32 to vector<2x1x128xf32>
    %c0 = arith.constant 0 : index
    %c0_0 = arith.constant 0 : index
    %c0_1 = arith.constant 0 : index
    %1 = vector.load %arg5[%c0, %c0_0, %c0_1] : memref<2x10x128xf32, #tpu.memory_space<vmem>>, vector<2x1x128xf32>
    tpu.vector_store %arg5[%c0, %c0_0, %c0_1], %0 {strides = array<i32>} : memref<2x10x128xf32, #tpu.memory_space<vmem>>, vector<2x1x128xf32>,
    %c0_2 = arith.constant 0 : index
    %c9 = arith.constant 9 : index
    %c0_3 = arith.constant 0 : index
    %2 = vector.load %arg5[%c0_2, %c9, %c0_3] : memref<2x10x128xf32, #tpu.memory_space<vmem>>, vector<2x1x128xf32>
    tpu.vector_store %arg5[%c0_2, %c9, %c0_3], %0 {strides = array<i32>} : memref<2x10x128xf32, #tpu.memory_space<vmem>>, vector<2x1x128xf32>,
    %c0_4 = arith.constant 0 : index
    %c0_5 = arith.constant 0 : index
    %c0_6 = arith.constant 0 : index
    %3 = vector.load %arg0[%c0_4, %c0_5, %c0_6] : memref<2x8x128xf32, #tpu.memory_space<vmem>>, vector<2x8x128xf32>
    %c0_7 = arith.constant 0 : index
    %c1 = arith.constant 1 : index
    %c0_8 = arith.constant 0 : index
    %4 = vector.load %arg5[%c0_7, %c1, %c0_8] : memref<2x10x128xf32, #tpu.memory_space<vmem>>, vector<2x8x128xf32>
    tpu.vector_store %arg5[%c0_7, %c1, %c0_8], %3 {strides = array<i32>} : memref<2x10x128xf32, #tpu.memory_space<vmem>>, vector<2x8x128xf32>,
    %c0_9 = arith.constant 0 : index
    %c0_10 = arith.constant 0 : index
    %c0_11 = arith.constant 0 : index
    %c0_12 = arith.constant 0 : index
    %5 = vector.load %arg1[%c0_9, %c0_10, %c0_11, %c0_12] : memref<4x3x3x128xf32, #tpu.memory_space<vmem>>, vector<1x3x3x128xf32>
    %6 = vector.shape_cast %5 : vector<1x3x3x128xf32> to vector<3x3x128xf32>
    %c0_13 = arith.constant 0 : index
    %c0_14 = arith.constant 0 : index
    %c0_15 = arith.constant 0 : index
    %7 = vector.load %arg5[%c0_13, %c0_14, %c0_15] : memref<2x10x128xf32, #tpu.memory_space<vmem>>, vector<2x10x128xf32>
    %c16_i32 = arith.constant 16 : i32
    %8 = tpu.dynamic_rotate %7 by %c16_i32 dim 2 : vector<2x10x128xf32>, i32 -> vector<2x10x128xf32>
    %c0_16 = arith.constant 0 : index
    %c0_17 = arith.constant 0 : index
    %c0_18 = arith.constant 0 : index
    %9 = vector.load %arg6[%c0_16, %c0_17, %c0_18] : memref<2x10x128xf32, #tpu.memory_space<vmem>>, vector<2x10x128xf32>
    tpu.vector_store %arg6[%c0_16, %c0_17, %c0_18], %8 {strides = array<i32>} : memref<2x10x128xf32, #tpu.memory_space<vmem>>, vector<2x10x128xf32>,
    %c112_i32 = arith.constant 112 : i32
    %10 = tpu.dynamic_rotate %7 by %c112_i32 dim 2 : vector<2x10x128xf32>, i32 -> vector<2x10x128xf32>
    %c0_19 = arith.constant 0 : index
    %c0_20 = arith.constant 0 : index
    %c0_21 = arith.constant 0 : index
    %11 = vector.load %arg7[%c0_19, %c0_20, %c0_21] : memref<2x10x128xf32, #tpu.memory_space<vmem>>, vector<2x10x128xf32>
    tpu.vector_store %arg7[%c0_19, %c0_20, %c0_21], %10 {strides = array<i32>} : memref<2x10x128xf32, #tpu.memory_space<vmem>>, vector<2x10x128xf32>,
    %c0_22 = arith.constant 0 : index
    %c0_23 = arith.constant 0 : index
    %c0_24 = arith.constant 0 : index
    %12 = vector.load %arg6[%c0_22, %c0_23, %c0_24] : memref<2x10x128xf32, #tpu.memory_space<vmem>>, vector<2x8x128xf32>
    %13 = vector.extract_strided_slice %6 {offsets = [0, 0, 0], sizes = [1, 1, 128], strides = [1, 1, 1]} : vector<3x3x128xf32> to vector<1x1x128xf32>
    %14 = vector.broadcast %13 : vector<1x1x128xf32> to vector<2x8x128xf32>
    %15 = arith.mulf %12, %14 : vector<2x8x128xf32>
    %c0_25 = arith.constant 0 : index
    %c0_26 = arith.constant 0 : index
    %c0_27 = arith.constant 0 : index
    %16 = vector.load %arg5[%c0_25, %c0_26, %c0_27] : memref<2x10x128xf32, #tpu.memory_space<vmem>>, vector<2x8x128xf32>
    %17 = vector.extract_strided_slice %6 {offsets = [0, 1, 0], sizes = [1, 1, 128], strides = [1, 1, 1]} : vector<3x3x128xf32> to vector<1x1x128xf32>
    %18 = vector.broadcast %17 : vector<1x1x128xf32> to vector<2x8x128xf32>
    %19 = arith.mulf %16, %18 : vector<2x8x128xf32>
    %20 = arith.addf %15, %19 : vector<2x8x128xf32>
    %c0_28 = arith.constant 0 : index
    %c0_29 = arith.constant 0 : index
    %c0_30 = arith.constant 0 : index
    %21 = vector.load %arg7[%c0_28, %c0_29, %c0_30] : memref<2x10x128xf32, #tpu.memory_space<vmem>>, vector<2x8x128xf32>
    %22 = vector.extract_strided_slice %6 {offsets = [0, 2, 0], sizes = [1, 1, 128], strides = [1, 1, 1]} : vector<3x3x128xf32> to vector<1x1x128xf32>
    %23 = vector.broadcast %22 : vector<1x1x128xf32> to vector<2x8x128xf32>
    %24 = arith.mulf %21, %23 : vector<2x8x128xf32>
    %25 = arith.addf %20, %24 : vector<2x8x128xf32>
    %c0_31 = arith.constant 0 : index
    %c1_32 = arith.constant 1 : index
    %c0_33 = arith.constant 0 : index
    %26 = vector.load %arg6[%c0_31, %c1_32, %c0_33] : memref<2x10x128xf32, #tpu.memory_space<vmem>>, vector<2x8x128xf32>
    %27 = vector.extract_strided_slice %6 {offsets = [1, 0, 0], sizes = [1, 1, 128], strides = [1, 1, 1]} : vector<3x3x128xf32> to vector<1x1x128xf32>
    %28 = vector.broadcast %27 : vector<1x1x128xf32> to vector<2x8x128xf32>
    %29 = arith.mulf %26, %28 : vector<2x8x128xf32>
    %c0_34 = arith.constant 0 : index
    %c1_35 = arith.constant 1 : index
    %c0_36 = arith.constant 0 : index
    %30 = vector.load %arg5[%c0_34, %c1_35, %c0_36] : memref<2x10x128xf32, #tpu.memory_space<vmem>>, vector<2x8x128xf32>
    %31 = vector.extract_strided_slice %6 {offsets = [1, 1, 0], sizes = [1, 1, 128], strides = [1, 1, 1]} : vector<3x3x128xf32> to vector<1x1x128xf32>
    %32 = vector.broadcast %31 : vector<1x1x128xf32> to vector<2x8x128xf32>
    %33 = arith.mulf %30, %32 : vector<2x8x128xf32>
    %34 = arith.addf %29, %33 : vector<2x8x128xf32>
    %c0_37 = arith.constant 0 : index
    %c1_38 = arith.constant 1 : index
    %c0_39 = arith.constant 0 : index
    %35 = vector.load %arg7[%c0_37, %c1_38, %c0_39] : memref<2x10x128xf32, #tpu.memory_space<vmem>>, vector<2x8x128xf32>
    %36 = vector.extract_strided_slice %6 {offsets = [1, 2, 0], sizes = [1, 1, 128], strides = [1, 1, 1]} : vector<3x3x128xf32> to vector<1x1x128xf32>
    %37 = vector.broadcast %36 : vector<1x1x128xf32> to vector<2x8x128xf32>
    %38 = arith.mulf %35, %37 : vector<2x8x128xf32>
    %39 = arith.addf %34, %38 : vector<2x8x128xf32>
    %40 = arith.addf %25, %39 : vector<2x8x128xf32>
    %c0_40 = arith.constant 0 : index
    %c2 = arith.constant 2 : index
    %c0_41 = arith.constant 0 : index
    %41 = vector.load %arg6[%c0_40, %c2, %c0_41] : memref<2x10x128xf32, #tpu.memory_space<vmem>>, vector<2x8x128xf32>
    %42 = vector.extract_strided_slice %6 {offsets = [2, 0, 0], sizes = [1, 1, 128], strides = [1, 1, 1]} : vector<3x3x128xf32> to vector<1x1x128xf32>
    %43 = vector.broadcast %42 : vector<1x1x128xf32> to vector<2x8x128xf32>
    %44 = arith.mulf %41, %43 : vector<2x8x128xf32>
    %c0_42 = arith.constant 0 : index
    %c2_43 = arith.constant 2 : index
    %c0_44 = arith.constant 0 : index
    %45 = vector.load %arg5[%c0_42, %c2_43, %c0_44] : memref<2x10x128xf32, #tpu.memory_space<vmem>>, vector<2x8x128xf32>
    %46 = vector.extract_strided_slice %6 {offsets = [2, 1, 0], sizes = [1, 1, 128], strides = [1, 1, 1]} : vector<3x3x128xf32> to vector<1x1x128xf32>
    %47 = vector.broadcast %46 : vector<1x1x128xf32> to vector<2x8x128xf32>
    %48 = arith.mulf %45, %47 : vector<2x8x128xf32>
    %49 = arith.addf %44, %48 : vector<2x8x128xf32>
    %c0_45 = arith.constant 0 : index
    %c2_46 = arith.constant 2 : index
    %c0_47 = arith.constant 0 : index
    %50 = vector.load %arg7[%c0_45, %c2_46, %c0_47] : memref<2x10x128xf32, #tpu.memory_space<vmem>>, vector<2x8x128xf32>
    %51 = vector.extract_strided_slice %6 {offsets = [2, 2, 0], sizes = [1, 1, 128], strides = [1, 1, 1]} : vector<3x3x128xf32> to vector<1x1x128xf32>
    %52 = vector.broadcast %51 : vector<1x1x128xf32> to vector<2x8x128xf32>
    %53 = arith.mulf %50, %52 : vector<2x8x128xf32>
    %54 = arith.addf %49, %53 : vector<2x8x128xf32>
    %55 = arith.addf %40, %54 : vector<2x8x128xf32>
    %56 = vector.shape_cast %55 : vector<2x8x128xf32> to vector<16x128xf32>
    %c0_48 = arith.constant 0 : index
    %c0_49 = arith.constant 0 : index
    %c0_50 = arith.constant 0 : index
    %57 = vector.load %arg2[%c0_48, %c0_49, %c0_50] : memref<4x128x128xbf16, #tpu.memory_space<vmem>>, vector<1x128x128xbf16>
    %58 = vector.shape_cast %57 : vector<1x128x128xbf16> to vector<128x128xbf16>
    %59 = arith.truncf %56 : vector<16x128xf32> to vector<16x128xbf16>
    %cst_51 = arith.constant dense<0.000000e+00> : vector<16x128xf32>
    %60 = tpu.matmul %59, %58, %cst_51 {dimension_numbers = #tpu.dot_dimension_numbers<[1], [0], [0], [1], [0, 0, 1, 1], [], []>} : vector<16x128xbf16>, vector<128x128xbf16>, vector<16x128xf32> -> vector<16x128xf32>
    %cst_52 = arith.constant dense<0.000000e+00> : vector<128xf32>
    %61 = vector.multi_reduction <add>, %60, %cst_52 [0] : vector<16x128xf32> to vector<128xf32>
    %62 = vector.shape_cast %61 : vector<128xf32> to vector<1x128xf32>
    %63 = arith.mulf %60, %60 : vector<16x128xf32>
    %cst_53 = arith.constant dense<0.000000e+00> : vector<128xf32>
    %64 = vector.multi_reduction <add>, %63, %cst_53 [0] : vector<16x128xf32> to vector<128xf32>
    %65 = vector.shape_cast %64 : vector<128xf32> to vector<1x128xf32>
    %c16_i32_54 = arith.constant 16 : i32
    %66 = tpu.dynamic_rotate %62 by %c16_i32_54 dim 1 : vector<1x128xf32>, i32 -> vector<1x128xf32>
    %67 = arith.addf %62, %66 : vector<1x128xf32>
    %c32_i32 = arith.constant 32 : i32
    %68 = tpu.dynamic_rotate %67 by %c32_i32 dim 1 : vector<1x128xf32>, i32 -> vector<1x128xf32>
    %69 = arith.addf %67, %68 : vector<1x128xf32>
    %c64_i32 = arith.constant 64 : i32
    %70 = tpu.dynamic_rotate %69 by %c64_i32 dim 1 : vector<1x128xf32>, i32 -> vector<1x128xf32>
    %71 = arith.addf %69, %70 : vector<1x128xf32>
    %c16_i32_55 = arith.constant 16 : i32
    %72 = tpu.dynamic_rotate %65 by %c16_i32_55 dim 1 : vector<1x128xf32>, i32 -> vector<1x128xf32>
    %73 = arith.addf %65, %72 : vector<1x128xf32>
    %c32_i32_56 = arith.constant 32 : i32
    %74 = tpu.dynamic_rotate %73 by %c32_i32_56 dim 1 : vector<1x128xf32>, i32 -> vector<1x128xf32>
    %75 = arith.addf %73, %74 : vector<1x128xf32>
    %c64_i32_57 = arith.constant 64 : i32
    %76 = tpu.dynamic_rotate %75 by %c64_i32_57 dim 1 : vector<1x128xf32>, i32 -> vector<1x128xf32>
    %77 = arith.addf %75, %76 : vector<1x128xf32>
    %cst_58 = arith.constant 7.812500e-03 : f32
    %78 = vector.broadcast %cst_58 : f32 to vector<1x128xf32>
    %79 = arith.mulf %71, %78 : vector<1x128xf32>
    %cst_59 = arith.constant 7.812500e-03 : f32
    %80 = vector.broadcast %cst_59 : f32 to vector<1x128xf32>
    %81 = arith.mulf %77, %80 : vector<1x128xf32>
    %82 = arith.mulf %79, %79 : vector<1x128xf32>
    %83 = arith.subf %81, %82 : vector<1x128xf32>
    %c0_60 = arith.constant 0 : index
    %c0_61 = arith.constant 0 : index
    %c0_62 = arith.constant 0 : index
    %84 = vector.load %arg3[%c0_60, %c0_61, %c0_62] : memref<4x2x128xf32, #tpu.memory_space<vmem>>, vector<1x2x128xf32>
    %85 = vector.shape_cast %84 : vector<1x2x128xf32> to vector<2x128xf32>
    %86 = vector.extract_strided_slice %85 {offsets = [0, 0], sizes = [1, 128], strides = [1, 1]} : vector<2x128xf32> to vector<1x128xf32>
    %c0_63 = arith.constant 0 : index
    %c0_64 = arith.constant 0 : index
    %c0_65 = arith.constant 0 : index
    %87 = vector.load %arg3[%c0_63, %c0_64, %c0_65] : memref<4x2x128xf32, #tpu.memory_space<vmem>>, vector<1x2x128xf32>
    %88 = vector.shape_cast %87 : vector<1x2x128xf32> to vector<2x128xf32>
    %89 = vector.extract_strided_slice %88 {offsets = [1, 0], sizes = [1, 128], strides = [1, 1]} : vector<2x128xf32> to vector<1x128xf32>
    %cst_66 = arith.constant 9.99999974E-6 : f32
    %90 = vector.broadcast %cst_66 : f32 to vector<1x128xf32>
    %91 = arith.addf %83, %90 : vector<1x128xf32>
    %92 = math.rsqrt %91 : vector<1x128xf32>
    %93 = arith.mulf %86, %92 : vector<1x128xf32>
    %94 = arith.mulf %79, %93 : vector<1x128xf32>
    %95 = arith.subf %89, %94 : vector<1x128xf32>
    %96 = vector.broadcast %93 : vector<1x128xf32> to vector<16x128xf32>
    %97 = arith.mulf %60, %96 : vector<16x128xf32>
    %98 = vector.broadcast %95 : vector<1x128xf32> to vector<16x128xf32>
    %99 = arith.addf %97, %98 : vector<16x128xf32>
    %cst_67 = arith.constant 0.000000e+00 : f32
    %100 = vector.broadcast %cst_67 : f32 to vector<16x128xf32>
    %101 = arith.maximumf %99, %100 : vector<16x128xf32>
    %102 = vector.shape_cast %101 : vector<16x128xf32> to vector<2x8x128xf32>
    %c0_68 = arith.constant 0 : index
    %c1_69 = arith.constant 1 : index
    %c0_70 = arith.constant 0 : index
    %103 = vector.load %arg5[%c0_68, %c1_69, %c0_70] : memref<2x10x128xf32, #tpu.memory_space<vmem>>, vector<2x8x128xf32>
    tpu.vector_store %arg5[%c0_68, %c1_69, %c0_70], %102 {strides = array<i32>} : memref<2x10x128xf32, #tpu.memory_space<vmem>>, vector<2x8x128xf32>,
    %c1_71 = arith.constant 1 : index
    %c0_72 = arith.constant 0 : index
    %c0_73 = arith.constant 0 : index
    %c0_74 = arith.constant 0 : index
    %104 = vector.load %arg1[%c1_71, %c0_72, %c0_73, %c0_74] : memref<4x3x3x128xf32, #tpu.memory_space<vmem>>, vector<1x3x3x128xf32>
    %105 = vector.shape_cast %104 : vector<1x3x3x128xf32> to vector<3x3x128xf32>
    %c0_75 = arith.constant 0 : index
    %c0_76 = arith.constant 0 : index
    %c0_77 = arith.constant 0 : index
    %106 = vector.load %arg5[%c0_75, %c0_76, %c0_77] : memref<2x10x128xf32, #tpu.memory_space<vmem>>, vector<2x10x128xf32>
    %c16_i32_78 = arith.constant 16 : i32
    %107 = tpu.dynamic_rotate %106 by %c16_i32_78 dim 2 : vector<2x10x128xf32>, i32 -> vector<2x10x128xf32>
    %c0_79 = arith.constant 0 : index
    %c0_80 = arith.constant 0 : index
    %c0_81 = arith.constant 0 : index
    %108 = vector.load %arg6[%c0_79, %c0_80, %c0_81] : memref<2x10x128xf32, #tpu.memory_space<vmem>>, vector<2x10x128xf32>
    tpu.vector_store %arg6[%c0_79, %c0_80, %c0_81], %107 {strides = array<i32>} : memref<2x10x128xf32, #tpu.memory_space<vmem>>, vector<2x10x128xf32>,
    %c112_i32_82 = arith.constant 112 : i32
    %109 = tpu.dynamic_rotate %106 by %c112_i32_82 dim 2 : vector<2x10x128xf32>, i32 -> vector<2x10x128xf32>
    %c0_83 = arith.constant 0 : index
    %c0_84 = arith.constant 0 : index
    %c0_85 = arith.constant 0 : index
    %110 = vector.load %arg7[%c0_83, %c0_84, %c0_85] : memref<2x10x128xf32, #tpu.memory_space<vmem>>, vector<2x10x128xf32>
    tpu.vector_store %arg7[%c0_83, %c0_84, %c0_85], %109 {strides = array<i32>} : memref<2x10x128xf32, #tpu.memory_space<vmem>>, vector<2x10x128xf32>,
    %c0_86 = arith.constant 0 : index
    %c0_87 = arith.constant 0 : index
    %c0_88 = arith.constant 0 : index
    %111 = vector.load %arg6[%c0_86, %c0_87, %c0_88] : memref<2x10x128xf32, #tpu.memory_space<vmem>>, vector<2x8x128xf32>
    %112 = vector.extract_strided_slice %105 {offsets = [0, 0, 0], sizes = [1, 1, 128], strides = [1, 1, 1]} : vector<3x3x128xf32> to vector<1x1x128xf32>
    %113 = vector.broadcast %112 : vector<1x1x128xf32> to vector<2x8x128xf32>
    %114 = arith.mulf %111, %113 : vector<2x8x128xf32>
    %c0_89 = arith.constant 0 : index
    %c0_90 = arith.constant 0 : index
    %c0_91 = arith.constant 0 : index
    %115 = vector.load %arg5[%c0_89, %c0_90, %c0_91] : memref<2x10x128xf32, #tpu.memory_space<vmem>>, vector<2x8x128xf32>
    %116 = vector.extract_strided_slice %105 {offsets = [0, 1, 0], sizes = [1, 1, 128], strides = [1, 1, 1]} : vector<3x3x128xf32> to vector<1x1x128xf32>
    %117 = vector.broadcast %116 : vector<1x1x128xf32> to vector<2x8x128xf32>
    %118 = arith.mulf %115, %117 : vector<2x8x128xf32>
    %119 = arith.addf %114, %118 : vector<2x8x128xf32>
    %c0_92 = arith.constant 0 : index
    %c0_93 = arith.constant 0 : index
    %c0_94 = arith.constant 0 : index
    %120 = vector.load %arg7[%c0_92, %c0_93, %c0_94] : memref<2x10x128xf32, #tpu.memory_space<vmem>>, vector<2x8x128xf32>
    %121 = vector.extract_strided_slice %105 {offsets = [0, 2, 0], sizes = [1, 1, 128], strides = [1, 1, 1]} : vector<3x3x128xf32> to vector<1x1x128xf32>
    %122 = vector.broadcast %121 : vector<1x1x128xf32> to vector<2x8x128xf32>
    %123 = arith.mulf %120, %122 : vector<2x8x128xf32>
    %124 = arith.addf %119, %123 : vector<2x8x128xf32>
    %c0_95 = arith.constant 0 : index
    %c1_96 = arith.constant 1 : index
    %c0_97 = arith.constant 0 : index
    %125 = vector.load %arg6[%c0_95, %c1_96, %c0_97] : memref<2x10x128xf32, #tpu.memory_space<vmem>>, vector<2x8x128xf32>
    %126 = vector.extract_strided_slice %105 {offsets = [1, 0, 0], sizes = [1, 1, 128], strides = [1, 1, 1]} : vector<3x3x128xf32> to vector<1x1x128xf32>
    %127 = vector.broadcast %126 : vector<1x1x128xf32> to vector<2x8x128xf32>
    %128 = arith.mulf %125, %127 : vector<2x8x128xf32>
    %c0_98 = arith.constant 0 : index
    %c1_99 = arith.constant 1 : index
    %c0_100 = arith.constant 0 : index
    %129 = vector.load %arg5[%c0_98, %c1_99, %c0_100] : memref<2x10x128xf32, #tpu.memory_space<vmem>>, vector<2x8x128xf32>
    %130 = vector.extract_strided_slice %105 {offsets = [1, 1, 0], sizes = [1, 1, 128], strides = [1, 1, 1]} : vector<3x3x128xf32> to vector<1x1x128xf32>
    %131 = vector.broadcast %130 : vector<1x1x128xf32> to vector<2x8x128xf32>
    %132 = arith.mulf %129, %131 : vector<2x8x128xf32>
    %133 = arith.addf %128, %132 : vector<2x8x128xf32>
    %c0_101 = arith.constant 0 : index
    %c1_102 = arith.constant 1 : index
    %c0_103 = arith.constant 0 : index
    %134 = vector.load %arg7[%c0_101, %c1_102, %c0_103] : memref<2x10x128xf32, #tpu.memory_space<vmem>>, vector<2x8x128xf32>
    %135 = vector.extract_strided_slice %105 {offsets = [1, 2, 0], sizes = [1, 1, 128], strides = [1, 1, 1]} : vector<3x3x128xf32> to vector<1x1x128xf32>
    %136 = vector.broadcast %135 : vector<1x1x128xf32> to vector<2x8x128xf32>
    %137 = arith.mulf %134, %136 : vector<2x8x128xf32>
    %138 = arith.addf %133, %137 : vector<2x8x128xf32>
    %139 = arith.addf %124, %138 : vector<2x8x128xf32>
    %c0_104 = arith.constant 0 : index
    %c2_105 = arith.constant 2 : index
    %c0_106 = arith.constant 0 : index
    %140 = vector.load %arg6[%c0_104, %c2_105, %c0_106] : memref<2x10x128xf32, #tpu.memory_space<vmem>>, vector<2x8x128xf32>
    %141 = vector.extract_strided_slice %105 {offsets = [2, 0, 0], sizes = [1, 1, 128], strides = [1, 1, 1]} : vector<3x3x128xf32> to vector<1x1x128xf32>
    %142 = vector.broadcast %141 : vector<1x1x128xf32> to vector<2x8x128xf32>
    %143 = arith.mulf %140, %142 : vector<2x8x128xf32>
    %c0_107 = arith.constant 0 : index
    %c2_108 = arith.constant 2 : index
    %c0_109 = arith.constant 0 : index
    %144 = vector.load %arg5[%c0_107, %c2_108, %c0_109] : memref<2x10x128xf32, #tpu.memory_space<vmem>>, vector<2x8x128xf32>
    %145 = vector.extract_strided_slice %105 {offsets = [2, 1, 0], sizes = [1, 1, 128], strides = [1, 1, 1]} : vector<3x3x128xf32> to vector<1x1x128xf32>
    %146 = vector.broadcast %145 : vector<1x1x128xf32> to vector<2x8x128xf32>
    %147 = arith.mulf %144, %146 : vector<2x8x128xf32>
    %148 = arith.addf %143, %147 : vector<2x8x128xf32>
    %c0_110 = arith.constant 0 : index
    %c2_111 = arith.constant 2 : index
    %c0_112 = arith.constant 0 : index
    %149 = vector.load %arg7[%c0_110, %c2_111, %c0_112] : memref<2x10x128xf32, #tpu.memory_space<vmem>>, vector<2x8x128xf32>
    %150 = vector.extract_strided_slice %105 {offsets = [2, 2, 0], sizes = [1, 1, 128], strides = [1, 1, 1]} : vector<3x3x128xf32> to vector<1x1x128xf32>
    %151 = vector.broadcast %150 : vector<1x1x128xf32> to vector<2x8x128xf32>
    %152 = arith.mulf %149, %151 : vector<2x8x128xf32>
    %153 = arith.addf %148, %152 : vector<2x8x128xf32>
    %154 = arith.addf %139, %153 : vector<2x8x128xf32>
    %155 = vector.shape_cast %154 : vector<2x8x128xf32> to vector<16x128xf32>
    %c1_113 = arith.constant 1 : index
    %c0_114 = arith.constant 0 : index
    %c0_115 = arith.constant 0 : index
    %156 = vector.load %arg2[%c1_113, %c0_114, %c0_115] : memref<4x128x128xbf16, #tpu.memory_space<vmem>>, vector<1x128x128xbf16>
    %157 = vector.shape_cast %156 : vector<1x128x128xbf16> to vector<128x128xbf16>
    %158 = arith.truncf %155 : vector<16x128xf32> to vector<16x128xbf16>
    %cst_116 = arith.constant dense<0.000000e+00> : vector<16x128xf32>
    %159 = tpu.matmul %158, %157, %cst_116 {dimension_numbers = #tpu.dot_dimension_numbers<[1], [0], [0], [1], [0, 0, 1, 1], [], []>} : vector<16x128xbf16>, vector<128x128xbf16>, vector<16x128xf32> -> vector<16x128xf32>
    %cst_117 = arith.constant dense<0.000000e+00> : vector<128xf32>
    %160 = vector.multi_reduction <add>, %159, %cst_117 [0] : vector<16x128xf32> to vector<128xf32>
    %161 = vector.shape_cast %160 : vector<128xf32> to vector<1x128xf32>
    %162 = arith.mulf %159, %159 : vector<16x128xf32>
    %cst_118 = arith.constant dense<0.000000e+00> : vector<128xf32>
    %163 = vector.multi_reduction <add>, %162, %cst_118 [0] : vector<16x128xf32> to vector<128xf32>
    %164 = vector.shape_cast %163 : vector<128xf32> to vector<1x128xf32>
    %c16_i32_119 = arith.constant 16 : i32
    %165 = tpu.dynamic_rotate %161 by %c16_i32_119 dim 1 : vector<1x128xf32>, i32 -> vector<1x128xf32>
    %166 = arith.addf %161, %165 : vector<1x128xf32>
    %c32_i32_120 = arith.constant 32 : i32
    %167 = tpu.dynamic_rotate %166 by %c32_i32_120 dim 1 : vector<1x128xf32>, i32 -> vector<1x128xf32>
    %168 = arith.addf %166, %167 : vector<1x128xf32>
    %c64_i32_121 = arith.constant 64 : i32
    %169 = tpu.dynamic_rotate %168 by %c64_i32_121 dim 1 : vector<1x128xf32>, i32 -> vector<1x128xf32>
    %170 = arith.addf %168, %169 : vector<1x128xf32>
    %c16_i32_122 = arith.constant 16 : i32
    %171 = tpu.dynamic_rotate %164 by %c16_i32_122 dim 1 : vector<1x128xf32>, i32 -> vector<1x128xf32>
    %172 = arith.addf %164, %171 : vector<1x128xf32>
    %c32_i32_123 = arith.constant 32 : i32
    %173 = tpu.dynamic_rotate %172 by %c32_i32_123 dim 1 : vector<1x128xf32>, i32 -> vector<1x128xf32>
    %174 = arith.addf %172, %173 : vector<1x128xf32>
    %c64_i32_124 = arith.constant 64 : i32
    %175 = tpu.dynamic_rotate %174 by %c64_i32_124 dim 1 : vector<1x128xf32>, i32 -> vector<1x128xf32>
    %176 = arith.addf %174, %175 : vector<1x128xf32>
    %cst_125 = arith.constant 7.812500e-03 : f32
    %177 = vector.broadcast %cst_125 : f32 to vector<1x128xf32>
    %178 = arith.mulf %170, %177 : vector<1x128xf32>
    %cst_126 = arith.constant 7.812500e-03 : f32
    %179 = vector.broadcast %cst_126 : f32 to vector<1x128xf32>
    %180 = arith.mulf %176, %179 : vector<1x128xf32>
    %181 = arith.mulf %178, %178 : vector<1x128xf32>
    %182 = arith.subf %180, %181 : vector<1x128xf32>
    %c1_127 = arith.constant 1 : index
    %c0_128 = arith.constant 0 : index
    %c0_129 = arith.constant 0 : index
    %183 = vector.load %arg3[%c1_127, %c0_128, %c0_129] : memref<4x2x128xf32, #tpu.memory_space<vmem>>, vector<1x2x128xf32>
    %184 = vector.shape_cast %183 : vector<1x2x128xf32> to vector<2x128xf32>
    %185 = vector.extract_strided_slice %184 {offsets = [0, 0], sizes = [1, 128], strides = [1, 1]} : vector<2x128xf32> to vector<1x128xf32>
    %c1_130 = arith.constant 1 : index
    %c0_131 = arith.constant 0 : index
    %c0_132 = arith.constant 0 : index
    %186 = vector.load %arg3[%c1_130, %c0_131, %c0_132] : memref<4x2x128xf32, #tpu.memory_space<vmem>>, vector<1x2x128xf32>
    %187 = vector.shape_cast %186 : vector<1x2x128xf32> to vector<2x128xf32>
    %188 = vector.extract_strided_slice %187 {offsets = [1, 0], sizes = [1, 128], strides = [1, 1]} : vector<2x128xf32> to vector<1x128xf32>
    %cst_133 = arith.constant 9.99999974E-6 : f32
    %189 = vector.broadcast %cst_133 : f32 to vector<1x128xf32>
    %190 = arith.addf %182, %189 : vector<1x128xf32>
    %191 = math.rsqrt %190 : vector<1x128xf32>
    %192 = arith.mulf %185, %191 : vector<1x128xf32>
    %193 = arith.mulf %178, %192 : vector<1x128xf32>
    %194 = arith.subf %188, %193 : vector<1x128xf32>
    %195 = vector.broadcast %192 : vector<1x128xf32> to vector<16x128xf32>
    %196 = arith.mulf %159, %195 : vector<16x128xf32>
    %197 = vector.broadcast %194 : vector<1x128xf32> to vector<16x128xf32>
    %198 = arith.addf %196, %197 : vector<16x128xf32>
    %cst_134 = arith.constant 0.000000e+00 : f32
    %199 = vector.broadcast %cst_134 : f32 to vector<16x128xf32>
    %200 = arith.maximumf %198, %199 : vector<16x128xf32>
    %201 = vector.shape_cast %200 : vector<16x128xf32> to vector<2x8x128xf32>
    %c0_135 = arith.constant 0 : index
    %c1_136 = arith.constant 1 : index
    %c0_137 = arith.constant 0 : index
    %202 = vector.load %arg5[%c0_135, %c1_136, %c0_137] : memref<2x10x128xf32, #tpu.memory_space<vmem>>, vector<2x8x128xf32>
    tpu.vector_store %arg5[%c0_135, %c1_136, %c0_137], %201 {strides = array<i32>} : memref<2x10x128xf32, #tpu.memory_space<vmem>>, vector<2x8x128xf32>,
    %c2_138 = arith.constant 2 : index
    %c0_139 = arith.constant 0 : index
    %c0_140 = arith.constant 0 : index
    %c0_141 = arith.constant 0 : index
    %203 = vector.load %arg1[%c2_138, %c0_139, %c0_140, %c0_141] : memref<4x3x3x128xf32, #tpu.memory_space<vmem>>, vector<1x3x3x128xf32>
    %204 = vector.shape_cast %203 : vector<1x3x3x128xf32> to vector<3x3x128xf32>
    %c0_142 = arith.constant 0 : index
    %c0_143 = arith.constant 0 : index
    %c0_144 = arith.constant 0 : index
    %205 = vector.load %arg5[%c0_142, %c0_143, %c0_144] : memref<2x10x128xf32, #tpu.memory_space<vmem>>, vector<2x10x128xf32>
    %c16_i32_145 = arith.constant 16 : i32
    %206 = tpu.dynamic_rotate %205 by %c16_i32_145 dim 2 : vector<2x10x128xf32>, i32 -> vector<2x10x128xf32>
    %c0_146 = arith.constant 0 : index
    %c0_147 = arith.constant 0 : index
    %c0_148 = arith.constant 0 : index
    %207 = vector.load %arg6[%c0_146, %c0_147, %c0_148] : memref<2x10x128xf32, #tpu.memory_space<vmem>>, vector<2x10x128xf32>
    tpu.vector_store %arg6[%c0_146, %c0_147, %c0_148], %206 {strides = array<i32>} : memref<2x10x128xf32, #tpu.memory_space<vmem>>, vector<2x10x128xf32>,
    %c112_i32_149 = arith.constant 112 : i32
    %208 = tpu.dynamic_rotate %205 by %c112_i32_149 dim 2 : vector<2x10x128xf32>, i32 -> vector<2x10x128xf32>
    %c0_150 = arith.constant 0 : index
    %c0_151 = arith.constant 0 : index
    %c0_152 = arith.constant 0 : index
    %209 = vector.load %arg7[%c0_150, %c0_151, %c0_152] : memref<2x10x128xf32, #tpu.memory_space<vmem>>, vector<2x10x128xf32>
    tpu.vector_store %arg7[%c0_150, %c0_151, %c0_152], %208 {strides = array<i32>} : memref<2x10x128xf32, #tpu.memory_space<vmem>>, vector<2x10x128xf32>,
    %c0_153 = arith.constant 0 : index
    %c0_154 = arith.constant 0 : index
    %c0_155 = arith.constant 0 : index
    %210 = vector.load %arg6[%c0_153, %c0_154, %c0_155] : memref<2x10x128xf32, #tpu.memory_space<vmem>>, vector<2x8x128xf32>
    %211 = vector.extract_strided_slice %204 {offsets = [0, 0, 0], sizes = [1, 1, 128], strides = [1, 1, 1]} : vector<3x3x128xf32> to vector<1x1x128xf32>
    %212 = vector.broadcast %211 : vector<1x1x128xf32> to vector<2x8x128xf32>
    %213 = arith.mulf %210, %212 : vector<2x8x128xf32>
    %c0_156 = arith.constant 0 : index
    %c0_157 = arith.constant 0 : index
    %c0_158 = arith.constant 0 : index
    %214 = vector.load %arg5[%c0_156, %c0_157, %c0_158] : memref<2x10x128xf32, #tpu.memory_space<vmem>>, vector<2x8x128xf32>
    %215 = vector.extract_strided_slice %204 {offsets = [0, 1, 0], sizes = [1, 1, 128], strides = [1, 1, 1]} : vector<3x3x128xf32> to vector<1x1x128xf32>
    %216 = vector.broadcast %215 : vector<1x1x128xf32> to vector<2x8x128xf32>
    %217 = arith.mulf %214, %216 : vector<2x8x128xf32>
    %218 = arith.addf %213, %217 : vector<2x8x128xf32>
    %c0_159 = arith.constant 0 : index
    %c0_160 = arith.constant 0 : index
    %c0_161 = arith.constant 0 : index
    %219 = vector.load %arg7[%c0_159, %c0_160, %c0_161] : memref<2x10x128xf32, #tpu.memory_space<vmem>>, vector<2x8x128xf32>
    %220 = vector.extract_strided_slice %204 {offsets = [0, 2, 0], sizes = [1, 1, 128], strides = [1, 1, 1]} : vector<3x3x128xf32> to vector<1x1x128xf32>
    %221 = vector.broadcast %220 : vector<1x1x128xf32> to vector<2x8x128xf32>
    %222 = arith.mulf %219, %221 : vector<2x8x128xf32>
    %223 = arith.addf %218, %222 : vector<2x8x128xf32>
    %c0_162 = arith.constant 0 : index
    %c1_163 = arith.constant 1 : index
    %c0_164 = arith.constant 0 : index
    %224 = vector.load %arg6[%c0_162, %c1_163, %c0_164] : memref<2x10x128xf32, #tpu.memory_space<vmem>>, vector<2x8x128xf32>
    %225 = vector.extract_strided_slice %204 {offsets = [1, 0, 0], sizes = [1, 1, 128], strides = [1, 1, 1]} : vector<3x3x128xf32> to vector<1x1x128xf32>
    %226 = vector.broadcast %225 : vector<1x1x128xf32> to vector<2x8x128xf32>
    %227 = arith.mulf %224, %226 : vector<2x8x128xf32>
    %c0_165 = arith.constant 0 : index
    %c1_166 = arith.constant 1 : index
    %c0_167 = arith.constant 0 : index
    %228 = vector.load %arg5[%c0_165, %c1_166, %c0_167] : memref<2x10x128xf32, #tpu.memory_space<vmem>>, vector<2x8x128xf32>
    %229 = vector.extract_strided_slice %204 {offsets = [1, 1, 0], sizes = [1, 1, 128], strides = [1, 1, 1]} : vector<3x3x128xf32> to vector<1x1x128xf32>
    %230 = vector.broadcast %229 : vector<1x1x128xf32> to vector<2x8x128xf32>
    %231 = arith.mulf %228, %230 : vector<2x8x128xf32>
    %232 = arith.addf %227, %231 : vector<2x8x128xf32>
    %c0_168 = arith.constant 0 : index
    %c1_169 = arith.constant 1 : index
    %c0_170 = arith.constant 0 : index
    %233 = vector.load %arg7[%c0_168, %c1_169, %c0_170] : memref<2x10x128xf32, #tpu.memory_space<vmem>>, vector<2x8x128xf32>
    %234 = vector.extract_strided_slice %204 {offsets = [1, 2, 0], sizes = [1, 1, 128], strides = [1, 1, 1]} : vector<3x3x128xf32> to vector<1x1x128xf32>
    %235 = vector.broadcast %234 : vector<1x1x128xf32> to vector<2x8x128xf32>
    %236 = arith.mulf %233, %235 : vector<2x8x128xf32>
    %237 = arith.addf %232, %236 : vector<2x8x128xf32>
    %238 = arith.addf %223, %237 : vector<2x8x128xf32>
    %c0_171 = arith.constant 0 : index
    %c2_172 = arith.constant 2 : index
    %c0_173 = arith.constant 0 : index
    %239 = vector.load %arg6[%c0_171, %c2_172, %c0_173] : memref<2x10x128xf32, #tpu.memory_space<vmem>>, vector<2x8x128xf32>
    %240 = vector.extract_strided_slice %204 {offsets = [2, 0, 0], sizes = [1, 1, 128], strides = [1, 1, 1]} : vector<3x3x128xf32> to vector<1x1x128xf32>
    %241 = vector.broadcast %240 : vector<1x1x128xf32> to vector<2x8x128xf32>
    %242 = arith.mulf %239, %241 : vector<2x8x128xf32>
    %c0_174 = arith.constant 0 : index
    %c2_175 = arith.constant 2 : index
    %c0_176 = arith.constant 0 : index
    %243 = vector.load %arg5[%c0_174, %c2_175, %c0_176] : memref<2x10x128xf32, #tpu.memory_space<vmem>>, vector<2x8x128xf32>
    %244 = vector.extract_strided_slice %204 {offsets = [2, 1, 0], sizes = [1, 1, 128], strides = [1, 1, 1]} : vector<3x3x128xf32> to vector<1x1x128xf32>
    %245 = vector.broadcast %244 : vector<1x1x128xf32> to vector<2x8x128xf32>
    %246 = arith.mulf %243, %245 : vector<2x8x128xf32>
    %247 = arith.addf %242, %246 : vector<2x8x128xf32>
    %c0_177 = arith.constant 0 : index
    %c2_178 = arith.constant 2 : index
    %c0_179 = arith.constant 0 : index
    %248 = vector.load %arg7[%c0_177, %c2_178, %c0_179] : memref<2x10x128xf32, #tpu.memory_space<vmem>>, vector<2x8x128xf32>
    %249 = vector.extract_strided_slice %204 {offsets = [2, 2, 0], sizes = [1, 1, 128], strides = [1, 1, 1]} : vector<3x3x128xf32> to vector<1x1x128xf32>
    %250 = vector.broadcast %249 : vector<1x1x128xf32> to vector<2x8x128xf32>
    %251 = arith.mulf %248, %250 : vector<2x8x128xf32>
    %252 = arith.addf %247, %251 : vector<2x8x128xf32>
    %253 = arith.addf %238, %252 : vector<2x8x128xf32>
    %254 = vector.shape_cast %253 : vector<2x8x128xf32> to vector<16x128xf32>
    %c2_180 = arith.constant 2 : index
    %c0_181 = arith.constant 0 : index
    %c0_182 = arith.constant 0 : index
    %255 = vector.load %arg2[%c2_180, %c0_181, %c0_182] : memref<4x128x128xbf16, #tpu.memory_space<vmem>>, vector<1x128x128xbf16>
    %256 = vector.shape_cast %255 : vector<1x128x128xbf16> to vector<128x128xbf16>
    %257 = arith.truncf %254 : vector<16x128xf32> to vector<16x128xbf16>
    %cst_183 = arith.constant dense<0.000000e+00> : vector<16x128xf32>
    %258 = tpu.matmul %257, %256, %cst_183 {dimension_numbers = #tpu.dot_dimension_numbers<[1], [0], [0], [1], [0, 0, 1, 1], [], []>} : vector<16x128xbf16>, vector<128x128xbf16>, vector<16x128xf32> -> vector<16x128xf32>
    %cst_184 = arith.constant dense<0.000000e+00> : vector<128xf32>
    %259 = vector.multi_reduction <add>, %258, %cst_184 [0] : vector<16x128xf32> to vector<128xf32>
    %260 = vector.shape_cast %259 : vector<128xf32> to vector<1x128xf32>
    %261 = arith.mulf %258, %258 : vector<16x128xf32>
    %cst_185 = arith.constant dense<0.000000e+00> : vector<128xf32>
    %262 = vector.multi_reduction <add>, %261, %cst_185 [0] : vector<16x128xf32> to vector<128xf32>
    %263 = vector.shape_cast %262 : vector<128xf32> to vector<1x128xf32>
    %c16_i32_186 = arith.constant 16 : i32
    %264 = tpu.dynamic_rotate %260 by %c16_i32_186 dim 1 : vector<1x128xf32>, i32 -> vector<1x128xf32>
    %265 = arith.addf %260, %264 : vector<1x128xf32>
    %c32_i32_187 = arith.constant 32 : i32
    %266 = tpu.dynamic_rotate %265 by %c32_i32_187 dim 1 : vector<1x128xf32>, i32 -> vector<1x128xf32>
    %267 = arith.addf %265, %266 : vector<1x128xf32>
    %c64_i32_188 = arith.constant 64 : i32
    %268 = tpu.dynamic_rotate %267 by %c64_i32_188 dim 1 : vector<1x128xf32>, i32 -> vector<1x128xf32>
    %269 = arith.addf %267, %268 : vector<1x128xf32>
    %c16_i32_189 = arith.constant 16 : i32
    %270 = tpu.dynamic_rotate %263 by %c16_i32_189 dim 1 : vector<1x128xf32>, i32 -> vector<1x128xf32>
    %271 = arith.addf %263, %270 : vector<1x128xf32>
    %c32_i32_190 = arith.constant 32 : i32
    %272 = tpu.dynamic_rotate %271 by %c32_i32_190 dim 1 : vector<1x128xf32>, i32 -> vector<1x128xf32>
    %273 = arith.addf %271, %272 : vector<1x128xf32>
    %c64_i32_191 = arith.constant 64 : i32
    %274 = tpu.dynamic_rotate %273 by %c64_i32_191 dim 1 : vector<1x128xf32>, i32 -> vector<1x128xf32>
    %275 = arith.addf %273, %274 : vector<1x128xf32>
    %cst_192 = arith.constant 7.812500e-03 : f32
    %276 = vector.broadcast %cst_192 : f32 to vector<1x128xf32>
    %277 = arith.mulf %269, %276 : vector<1x128xf32>
    %cst_193 = arith.constant 7.812500e-03 : f32
    %278 = vector.broadcast %cst_193 : f32 to vector<1x128xf32>
    %279 = arith.mulf %275, %278 : vector<1x128xf32>
    %280 = arith.mulf %277, %277 : vector<1x128xf32>
    %281 = arith.subf %279, %280 : vector<1x128xf32>
    %c2_194 = arith.constant 2 : index
    %c0_195 = arith.constant 0 : index
    %c0_196 = arith.constant 0 : index
    %282 = vector.load %arg3[%c2_194, %c0_195, %c0_196] : memref<4x2x128xf32, #tpu.memory_space<vmem>>, vector<1x2x128xf32>
    %283 = vector.shape_cast %282 : vector<1x2x128xf32> to vector<2x128xf32>
    %284 = vector.extract_strided_slice %283 {offsets = [0, 0], sizes = [1, 128], strides = [1, 1]} : vector<2x128xf32> to vector<1x128xf32>
    %c2_197 = arith.constant 2 : index
    %c0_198 = arith.constant 0 : index
    %c0_199 = arith.constant 0 : index
    %285 = vector.load %arg3[%c2_197, %c0_198, %c0_199] : memref<4x2x128xf32, #tpu.memory_space<vmem>>, vector<1x2x128xf32>
    %286 = vector.shape_cast %285 : vector<1x2x128xf32> to vector<2x128xf32>
    %287 = vector.extract_strided_slice %286 {offsets = [1, 0], sizes = [1, 128], strides = [1, 1]} : vector<2x128xf32> to vector<1x128xf32>
    %cst_200 = arith.constant 9.99999974E-6 : f32
    %288 = vector.broadcast %cst_200 : f32 to vector<1x128xf32>
    %289 = arith.addf %281, %288 : vector<1x128xf32>
    %290 = math.rsqrt %289 : vector<1x128xf32>
    %291 = arith.mulf %284, %290 : vector<1x128xf32>
    %292 = arith.mulf %277, %291 : vector<1x128xf32>
    %293 = arith.subf %287, %292 : vector<1x128xf32>
    %294 = vector.broadcast %291 : vector<1x128xf32> to vector<16x128xf32>
    %295 = arith.mulf %258, %294 : vector<16x128xf32>
    %296 = vector.broadcast %293 : vector<1x128xf32> to vector<16x128xf32>
    %297 = arith.addf %295, %296 : vector<16x128xf32>
    %cst_201 = arith.constant 0.000000e+00 : f32
    %298 = vector.broadcast %cst_201 : f32 to vector<16x128xf32>
    %299 = arith.maximumf %297, %298 : vector<16x128xf32>
    %300 = vector.shape_cast %299 : vector<16x128xf32> to vector<2x8x128xf32>
    %c0_202 = arith.constant 0 : index
    %c1_203 = arith.constant 1 : index
    %c0_204 = arith.constant 0 : index
    %301 = vector.load %arg5[%c0_202, %c1_203, %c0_204] : memref<2x10x128xf32, #tpu.memory_space<vmem>>, vector<2x8x128xf32>
    tpu.vector_store %arg5[%c0_202, %c1_203, %c0_204], %300 {strides = array<i32>} : memref<2x10x128xf32, #tpu.memory_space<vmem>>, vector<2x8x128xf32>,
    %c3 = arith.constant 3 : index
    %c0_205 = arith.constant 0 : index
    %c0_206 = arith.constant 0 : index
    %c0_207 = arith.constant 0 : index
    %302 = vector.load %arg1[%c3, %c0_205, %c0_206, %c0_207] : memref<4x3x3x128xf32, #tpu.memory_space<vmem>>, vector<1x3x3x128xf32>
    %303 = vector.shape_cast %302 : vector<1x3x3x128xf32> to vector<3x3x128xf32>
    %c0_208 = arith.constant 0 : index
    %c0_209 = arith.constant 0 : index
    %c0_210 = arith.constant 0 : index
    %304 = vector.load %arg5[%c0_208, %c0_209, %c0_210] : memref<2x10x128xf32, #tpu.memory_space<vmem>>, vector<2x10x128xf32>
    %c16_i32_211 = arith.constant 16 : i32
    %305 = tpu.dynamic_rotate %304 by %c16_i32_211 dim 2 : vector<2x10x128xf32>, i32 -> vector<2x10x128xf32>
    %c0_212 = arith.constant 0 : index
    %c0_213 = arith.constant 0 : index
    %c0_214 = arith.constant 0 : index
    %306 = vector.load %arg6[%c0_212, %c0_213, %c0_214] : memref<2x10x128xf32, #tpu.memory_space<vmem>>, vector<2x10x128xf32>
    tpu.vector_store %arg6[%c0_212, %c0_213, %c0_214], %305 {strides = array<i32>} : memref<2x10x128xf32, #tpu.memory_space<vmem>>, vector<2x10x128xf32>,
    %c112_i32_215 = arith.constant 112 : i32
    %307 = tpu.dynamic_rotate %304 by %c112_i32_215 dim 2 : vector<2x10x128xf32>, i32 -> vector<2x10x128xf32>
    %c0_216 = arith.constant 0 : index
    %c0_217 = arith.constant 0 : index
    %c0_218 = arith.constant 0 : index
    %308 = vector.load %arg7[%c0_216, %c0_217, %c0_218] : memref<2x10x128xf32, #tpu.memory_space<vmem>>, vector<2x10x128xf32>
    tpu.vector_store %arg7[%c0_216, %c0_217, %c0_218], %307 {strides = array<i32>} : memref<2x10x128xf32, #tpu.memory_space<vmem>>, vector<2x10x128xf32>,
    %c0_219 = arith.constant 0 : index
    %c0_220 = arith.constant 0 : index
    %c0_221 = arith.constant 0 : index
    %309 = vector.load %arg6[%c0_219, %c0_220, %c0_221] : memref<2x10x128xf32, #tpu.memory_space<vmem>>, vector<2x8x128xf32>
    %310 = vector.extract_strided_slice %303 {offsets = [0, 0, 0], sizes = [1, 1, 128], strides = [1, 1, 1]} : vector<3x3x128xf32> to vector<1x1x128xf32>
    %311 = vector.broadcast %310 : vector<1x1x128xf32> to vector<2x8x128xf32>
    %312 = arith.mulf %309, %311 : vector<2x8x128xf32>
    %c0_222 = arith.constant 0 : index
    %c0_223 = arith.constant 0 : index
    %c0_224 = arith.constant 0 : index
    %313 = vector.load %arg5[%c0_222, %c0_223, %c0_224] : memref<2x10x128xf32, #tpu.memory_space<vmem>>, vector<2x8x128xf32>
    %314 = vector.extract_strided_slice %303 {offsets = [0, 1, 0], sizes = [1, 1, 128], strides = [1, 1, 1]} : vector<3x3x128xf32> to vector<1x1x128xf32>
    %315 = vector.broadcast %314 : vector<1x1x128xf32> to vector<2x8x128xf32>
    %316 = arith.mulf %313, %315 : vector<2x8x128xf32>
    %317 = arith.addf %312, %316 : vector<2x8x128xf32>
    %c0_225 = arith.constant 0 : index
    %c0_226 = arith.constant 0 : index
    %c0_227 = arith.constant 0 : index
    %318 = vector.load %arg7[%c0_225, %c0_226, %c0_227] : memref<2x10x128xf32, #tpu.memory_space<vmem>>, vector<2x8x128xf32>
    %319 = vector.extract_strided_slice %303 {offsets = [0, 2, 0], sizes = [1, 1, 128], strides = [1, 1, 1]} : vector<3x3x128xf32> to vector<1x1x128xf32>
    %320 = vector.broadcast %319 : vector<1x1x128xf32> to vector<2x8x128xf32>
    %321 = arith.mulf %318, %320 : vector<2x8x128xf32>
    %322 = arith.addf %317, %321 : vector<2x8x128xf32>
    %c0_228 = arith.constant 0 : index
    %c1_229 = arith.constant 1 : index
    %c0_230 = arith.constant 0 : index
    %323 = vector.load %arg6[%c0_228, %c1_229, %c0_230] : memref<2x10x128xf32, #tpu.memory_space<vmem>>, vector<2x8x128xf32>
    %324 = vector.extract_strided_slice %303 {offsets = [1, 0, 0], sizes = [1, 1, 128], strides = [1, 1, 1]} : vector<3x3x128xf32> to vector<1x1x128xf32>
    %325 = vector.broadcast %324 : vector<1x1x128xf32> to vector<2x8x128xf32>
    %326 = arith.mulf %323, %325 : vector<2x8x128xf32>
    %c0_231 = arith.constant 0 : index
    %c1_232 = arith.constant 1 : index
    %c0_233 = arith.constant 0 : index
    %327 = vector.load %arg5[%c0_231, %c1_232, %c0_233] : memref<2x10x128xf32, #tpu.memory_space<vmem>>, vector<2x8x128xf32>
    %328 = vector.extract_strided_slice %303 {offsets = [1, 1, 0], sizes = [1, 1, 128], strides = [1, 1, 1]} : vector<3x3x128xf32> to vector<1x1x128xf32>
    %329 = vector.broadcast %328 : vector<1x1x128xf32> to vector<2x8x128xf32>
    %330 = arith.mulf %327, %329 : vector<2x8x128xf32>
    %331 = arith.addf %326, %330 : vector<2x8x128xf32>
    %c0_234 = arith.constant 0 : index
    %c1_235 = arith.constant 1 : index
    %c0_236 = arith.constant 0 : index
    %332 = vector.load %arg7[%c0_234, %c1_235, %c0_236] : memref<2x10x128xf32, #tpu.memory_space<vmem>>, vector<2x8x128xf32>
    %333 = vector.extract_strided_slice %303 {offsets = [1, 2, 0], sizes = [1, 1, 128], strides = [1, 1, 1]} : vector<3x3x128xf32> to vector<1x1x128xf32>
    %334 = vector.broadcast %333 : vector<1x1x128xf32> to vector<2x8x128xf32>
    %335 = arith.mulf %332, %334 : vector<2x8x128xf32>
    %336 = arith.addf %331, %335 : vector<2x8x128xf32>
    %337 = arith.addf %322, %336 : vector<2x8x128xf32>
    %c0_237 = arith.constant 0 : index
    %c2_238 = arith.constant 2 : index
    %c0_239 = arith.constant 0 : index
    %338 = vector.load %arg6[%c0_237, %c2_238, %c0_239] : memref<2x10x128xf32, #tpu.memory_space<vmem>>, vector<2x8x128xf32>
    %339 = vector.extract_strided_slice %303 {offsets = [2, 0, 0], sizes = [1, 1, 128], strides = [1, 1, 1]} : vector<3x3x128xf32> to vector<1x1x128xf32>
    %340 = vector.broadcast %339 : vector<1x1x128xf32> to vector<2x8x128xf32>
    %341 = arith.mulf %338, %340 : vector<2x8x128xf32>
    %c0_240 = arith.constant 0 : index
    %c2_241 = arith.constant 2 : index
    %c0_242 = arith.constant 0 : index
    %342 = vector.load %arg5[%c0_240, %c2_241, %c0_242] : memref<2x10x128xf32, #tpu.memory_space<vmem>>, vector<2x8x128xf32>
    %343 = vector.extract_strided_slice %303 {offsets = [2, 1, 0], sizes = [1, 1, 128], strides = [1, 1, 1]} : vector<3x3x128xf32> to vector<1x1x128xf32>
    %344 = vector.broadcast %343 : vector<1x1x128xf32> to vector<2x8x128xf32>
    %345 = arith.mulf %342, %344 : vector<2x8x128xf32>
    %346 = arith.addf %341, %345 : vector<2x8x128xf32>
    %c0_243 = arith.constant 0 : index
    %c2_244 = arith.constant 2 : index
    %c0_245 = arith.constant 0 : index
    %347 = vector.load %arg7[%c0_243, %c2_244, %c0_245] : memref<2x10x128xf32, #tpu.memory_space<vmem>>, vector<2x8x128xf32>
    %348 = vector.extract_strided_slice %303 {offsets = [2, 2, 0], sizes = [1, 1, 128], strides = [1, 1, 1]} : vector<3x3x128xf32> to vector<1x1x128xf32>
    %349 = vector.broadcast %348 : vector<1x1x128xf32> to vector<2x8x128xf32>
    %350 = arith.mulf %347, %349 : vector<2x8x128xf32>
    %351 = arith.addf %346, %350 : vector<2x8x128xf32>
    %352 = arith.addf %337, %351 : vector<2x8x128xf32>
    %353 = vector.shape_cast %352 : vector<2x8x128xf32> to vector<16x128xf32>
    %c3_246 = arith.constant 3 : index
    %c0_247 = arith.constant 0 : index
    %c0_248 = arith.constant 0 : index
    %354 = vector.load %arg2[%c3_246, %c0_247, %c0_248] : memref<4x128x128xbf16, #tpu.memory_space<vmem>>, vector<1x128x128xbf16>
    %355 = vector.shape_cast %354 : vector<1x128x128xbf16> to vector<128x128xbf16>
    %356 = arith.truncf %353 : vector<16x128xf32> to vector<16x128xbf16>
    %cst_249 = arith.constant dense<0.000000e+00> : vector<16x128xf32>
    %357 = tpu.matmul %356, %355, %cst_249 {dimension_numbers = #tpu.dot_dimension_numbers<[1], [0], [0], [1], [0, 0, 1, 1], [], []>} : vector<16x128xbf16>, vector<128x128xbf16>, vector<16x128xf32> -> vector<16x128xf32>
    %cst_250 = arith.constant dense<0.000000e+00> : vector<128xf32>
    %358 = vector.multi_reduction <add>, %357, %cst_250 [0] : vector<16x128xf32> to vector<128xf32>
    %359 = vector.shape_cast %358 : vector<128xf32> to vector<1x128xf32>
    %360 = arith.mulf %357, %357 : vector<16x128xf32>
    %cst_251 = arith.constant dense<0.000000e+00> : vector<128xf32>
    %361 = vector.multi_reduction <add>, %360, %cst_251 [0] : vector<16x128xf32> to vector<128xf32>
    %362 = vector.shape_cast %361 : vector<128xf32> to vector<1x128xf32>
    %c16_i32_252 = arith.constant 16 : i32
    %363 = tpu.dynamic_rotate %359 by %c16_i32_252 dim 1 : vector<1x128xf32>, i32 -> vector<1x128xf32>
    %364 = arith.addf %359, %363 : vector<1x128xf32>
    %c32_i32_253 = arith.constant 32 : i32
    %365 = tpu.dynamic_rotate %364 by %c32_i32_253 dim 1 : vector<1x128xf32>, i32 -> vector<1x128xf32>
    %366 = arith.addf %364, %365 : vector<1x128xf32>
    %c64_i32_254 = arith.constant 64 : i32
    %367 = tpu.dynamic_rotate %366 by %c64_i32_254 dim 1 : vector<1x128xf32>, i32 -> vector<1x128xf32>
    %368 = arith.addf %366, %367 : vector<1x128xf32>
    %c16_i32_255 = arith.constant 16 : i32
    %369 = tpu.dynamic_rotate %362 by %c16_i32_255 dim 1 : vector<1x128xf32>, i32 -> vector<1x128xf32>
    %370 = arith.addf %362, %369 : vector<1x128xf32>
    %c32_i32_256 = arith.constant 32 : i32
    %371 = tpu.dynamic_rotate %370 by %c32_i32_256 dim 1 : vector<1x128xf32>, i32 -> vector<1x128xf32>
    %372 = arith.addf %370, %371 : vector<1x128xf32>
    %c64_i32_257 = arith.constant 64 : i32
    %373 = tpu.dynamic_rotate %372 by %c64_i32_257 dim 1 : vector<1x128xf32>, i32 -> vector<1x128xf32>
    %374 = arith.addf %372, %373 : vector<1x128xf32>
    %cst_258 = arith.constant 7.812500e-03 : f32
    %375 = vector.broadcast %cst_258 : f32 to vector<1x128xf32>
    %376 = arith.mulf %368, %375 : vector<1x128xf32>
    %cst_259 = arith.constant 7.812500e-03 : f32
    %377 = vector.broadcast %cst_259 : f32 to vector<1x128xf32>
    %378 = arith.mulf %374, %377 : vector<1x128xf32>
    %379 = arith.mulf %376, %376 : vector<1x128xf32>
    %380 = arith.subf %378, %379 : vector<1x128xf32>
    %c3_260 = arith.constant 3 : index
    %c0_261 = arith.constant 0 : index
    %c0_262 = arith.constant 0 : index
    %381 = vector.load %arg3[%c3_260, %c0_261, %c0_262] : memref<4x2x128xf32, #tpu.memory_space<vmem>>, vector<1x2x128xf32>
    %382 = vector.shape_cast %381 : vector<1x2x128xf32> to vector<2x128xf32>
    %383 = vector.extract_strided_slice %382 {offsets = [0, 0], sizes = [1, 128], strides = [1, 1]} : vector<2x128xf32> to vector<1x128xf32>
    %c3_263 = arith.constant 3 : index
    %c0_264 = arith.constant 0 : index
    %c0_265 = arith.constant 0 : index
    %384 = vector.load %arg3[%c3_263, %c0_264, %c0_265] : memref<4x2x128xf32, #tpu.memory_space<vmem>>, vector<1x2x128xf32>
    %385 = vector.shape_cast %384 : vector<1x2x128xf32> to vector<2x128xf32>
    %386 = vector.extract_strided_slice %385 {offsets = [1, 0], sizes = [1, 128], strides = [1, 1]} : vector<2x128xf32> to vector<1x128xf32>
    %cst_266 = arith.constant 9.99999974E-6 : f32
    %387 = vector.broadcast %cst_266 : f32 to vector<1x128xf32>
    %388 = arith.addf %380, %387 : vector<1x128xf32>
    %389 = math.rsqrt %388 : vector<1x128xf32>
    %390 = arith.mulf %383, %389 : vector<1x128xf32>
    %391 = arith.mulf %376, %390 : vector<1x128xf32>
    %392 = arith.subf %386, %391 : vector<1x128xf32>
    %393 = vector.broadcast %390 : vector<1x128xf32> to vector<16x128xf32>
    %394 = arith.mulf %357, %393 : vector<16x128xf32>
    %395 = vector.broadcast %392 : vector<1x128xf32> to vector<16x128xf32>
    %396 = arith.addf %394, %395 : vector<16x128xf32>
    %cst_267 = arith.constant 0.000000e+00 : f32
    %397 = vector.broadcast %cst_267 : f32 to vector<16x128xf32>
    %398 = arith.maximumf %396, %397 : vector<16x128xf32>
    %c0_268 = arith.constant 0 : index
    %c0_269 = arith.constant 0 : index
    %399 = vector.load %arg4[%c0_268, %c0_269] : memref<16x128xf32, #tpu.memory_space<vmem>>, vector<16x128xf32>
    tpu.vector_store %arg4[%c0_268, %c0_269], %398 {strides = array<i32>} : memref<16x128xf32, #tpu.memory_space<vmem>>, vector<16x128xf32>,
    return
  }
}

</mosaic_0001>

<llo_original>
// kernel: tile.56
$region0: #{tile.56}
  %s0 = inlined_call_operand.vmem [shape: f32[3,3,8,16], index: 0, kind: input, shape index: {}]
  %s1 = inlined_call_operand.vmem [shape: f32[3,3,128], index: 1, kind: output, shape index: {}]
  $region1: #{tile.56} parent=0
    #allocation0 [shape = 'u8[12288]{0}', space=vmem, size = 0x3000, scoped, tag = 'scoped mem for output reshape']
    %v2 = vld [vmem:[%s0] ss:$8 sm:$0xf]
    %v3 = vld [vmem:[%s0] ss:$8 sm:$0xf0]
    %vm4 = vcmask 1047556
    %v5 = vsel %vm4, %v3, %v2
    %vm6 = vcmask 130048
    %7 = vst.msk [vmem:[#allocation0] sm:$0x7] %vm6, %v5
    %s8 = scalar_lea.vmem [#allocation0], 5
    %9 = vst.msk [vmem:[%s8] sm:$0x38] %vm6, %v5
    %s10 = scalar_lea.vmem [#allocation0], 10
    %11 = vst.msk [vmem:[%s10] sm:$0xc0] %vm6, %v5
    %s12 = scalar_lea.vmem %s0, 64
    %v13 = vld [vmem:[%s12] sm:$0x1]
    %vm14 = vcmask 130048
    %s15 = scalar_lea.vmem [#allocation0], 18
    %16 = vst.msk [vmem:[%s15] sm:$0x1] %vm14, %v13
    %s17 = scalar_lea.vmem %s0, 7
    %v18 = vld [vmem:[%s17] ss:$8 sm:$0xf]
    %s19 = scalar_lea.vmem %s0, 7
    %v20 = vld [vmem:[%s19] ss:$8 sm:$0xf0]
    %vm21 = vcmask 1047556
    %v22 = vsel %vm21, %v20, %v18
    %23 = vrot.lane.b32.xlu0 %v22, 112
    %v24 = vpop.permute.xlu0 %23
    %vm25 = vcmask 1048448
    %26 = vst.msk [vmem:[#allocation0] sm:$0x7] %vm25, %v24
    %s27 = scalar_lea.vmem [#allocation0], 5
    %28 = vst.msk [vmem:[%s27] sm:$0x38] %vm25, %v24
    %s29 = scalar_lea.vmem [#allocation0], 10
    %30 = vst.msk [vmem:[%s29] sm:$0xc0] %vm25, %v24
    %s31 = scalar_lea.vmem %s0, 71
    %v32 = vld [vmem:[%s31] sm:$0x1]
    %33 = vrot.lane.b32.xlu0 %v32, 112
    %v34 = vpop.permute.xlu0 %33
    %vm35 = vcmask 1048448
    %s36 = scalar_lea.vmem [#allocation0], 18
    %37 = vst.msk [vmem:[%s36] sm:$0x1] %vm35, %v34
    %s38 = scalar_lea.vmem %s0, 6
    %v39 = vld [vmem:[%s38] ss:$8 sm:$0xf]
    %s40 = scalar_lea.vmem %s0, 6
    %v41 = vld [vmem:[%s40] ss:$8 sm:$0xf0]
    %vm42 = vcmask 1047556
    %v43 = vsel %vm42, %v41, %v39
    %44 = vrot.lane.b32.xlu0 %v43, 96
    %v45 = vpop.permute.xlu0 %44
    %vm46 = vcmask 917248
    %47 = vst.msk [vmem:[#allocation0] sm:$0x7] %vm46, %v45
    %s48 = scalar_lea.vmem [#allocation0], 5
    %49 = vst.msk [vmem:[%s48] sm:$0x38] %vm46, %v45
    %s50 = scalar_lea.vmem [#allocation0], 10
    %51 = vst.msk [vmem:[%s50] sm:$0xc0] %vm46, %v45
    %s52 = scalar_lea.vmem %s0, 70
    %v53 = vld [vmem:[%s52] sm:$0x1]
    %54 = vrot.lane.b32.xlu0 %v53, 96
    %v55 = vpop.permute.xlu0 %54
    %vm56 = vcmask 917248
    %s57 = scalar_lea.vmem [#allocation0], 18
    %58 = vst.msk [vmem:[%s57] sm:$0x1] %vm56, %v55
    %s59 = scalar_lea.vmem %s0, 5
    %v60 = vld [vmem:[%s59] ss:$8 sm:$0xf]
    %s61 = scalar_lea.vmem %s0, 5
    %v62 = vld [vmem:[%s61] ss:$8 sm:$0xf0]
    %vm63 = vcmask 1047556
    %v64 = vsel %vm63, %v62, %v60
    %65 = vrot.lane.b32.xlu0 %v64, 80
    %v66 = vpop.permute.xlu0 %65
    %vm67 = vcmask 786048
    %68 = vst.msk [vmem:[#allocation0] sm:$0x7] %vm67, %v66
    %s69 = scalar_lea.vmem [#allocation0], 5
    %70 = vst.msk [vmem:[%s69] sm:$0x38] %vm67, %v66
    %s71 = scalar_lea.vmem [#allocation0], 10
    %72 = vst.msk [vmem:[%s71] sm:$0xc0] %vm67, %v66
    %s73 = scalar_lea.vmem %s0, 69
    %v74 = vld [vmem:[%s73] sm:$0x1]
    %75 = vrot.lane.b32.xlu0 %v74, 80
    %v76 = vpop.permute.xlu0 %75
    %vm77 = vcmask 786048
    %s78 = scalar_lea.vmem [#allocation0], 18
    %79 = vst.msk [vmem:[%s78] sm:$0x1] %vm77, %v76
    %s80 = scalar_lea.vmem %s0, 4
    %v81 = vld [vmem:[%s80] ss:$8 sm:$0xf]
    %s82 = scalar_lea.vmem %s0, 4
    %v83 = vld [vmem:[%s82] ss:$8 sm:$0xf0]
    %vm84 = vcmask 1047556
    %v85 = vsel %vm84, %v83, %v81
    %86 = vrot.lane.b32.xlu0 %v85, 64
    %v87 = vpop.permute.xlu0 %86
    %vm88 = vcmask 654848
    %89 = vst.msk [vmem:[#allocation0] sm:$0x7] %vm88, %v87
    %s90 = scalar_lea.vmem [#allocation0], 5
    %91 = vst.msk [vmem:[%s90] sm:$0x38] %vm88, %v87
    %s92 = scalar_lea.vmem [#allocation0], 10
    %93 = vst.msk [vmem:[%s92] sm:$0xc0] %vm88, %v87
    %s94 = scalar_lea.vmem %s0, 68
    %v95 = vld [vmem:[%s94] sm:$0x1]
    %96 = vrot.lane.b32.xlu0 %v95, 64
    %v97 = vpop.permute.xlu0 %96
    %vm98 = vcmask 654848
    %s99 = scalar_lea.vmem [#allocation0], 18
    %100 = vst.msk [vmem:[%s99] sm:$0x1] %vm98, %v97
    %s101 = scalar_lea.vmem %s0, 3
    %v102 = vld [vmem:[%s101] ss:$8 sm:$0xf]
    %s103 = scalar_lea.vmem %s0, 3
    %v104 = vld [vmem:[%s103] ss:$8 sm:$0xf0]
    %vm105 = vcmask 1047556
    %v106 = vsel %vm105, %v104, %v102
    %107 = vrot.lane.b32.xlu0 %v106, 48
    %v108 = vpop.permute.xlu0 %107
    %vm109 = vcmask 523648
    %110 = vst.msk [vmem:[#allocation0] sm:$0x7] %vm109, %v108
    %s111 = scalar_lea.vmem [#allocation0], 5
    %112 = vst.msk [vmem:[%s111] sm:$0x38] %vm109, %v108
    %s113 = scalar_lea.vmem [#allocation0], 10
    %114 = vst.msk [vmem:[%s113] sm:$0xc0] %vm109, %v108
    %s115 = scalar_lea.vmem %s0, 67
    %v116 = vld [vmem:[%s115] sm:$0x1]
    %117 = vrot.lane.b32.xlu0 %v116, 48
    %v118 = vpop.permute.xlu0 %117
    %vm119 = vcmask 523648
    %s120 = scalar_lea.vmem [#allocation0], 18
    %121 = vst.msk [vmem:[%s120] sm:$0x1] %vm119, %v118
    %s122 = scalar_lea.vmem %s0, 2
    %v123 = vld [vmem:[%s122] ss:$8 sm:$0xf]
    %s124 = scalar_lea.vmem %s0, 2
    %v125 = vld [vmem:[%s124] ss:$8 sm:$0xf0]
    %vm126 = vcmask 1047556
    %v127 = vsel %vm126, %v125, %v123
    %128 = vrot.lane.b32.xlu0 %v127, 32
    %v129 = vpop.permute.xlu0 %128
    %vm130 = vcmask 392448
    %131 = vst.msk [vmem:[#allocation0] sm:$0x7] %vm130, %v129
    %s132 = scalar_lea.vmem [#allocation0], 5
    %133 = vst.msk [vmem:[%s132] sm:$0x38] %vm130, %v129
    %s134 = scalar_lea.vmem [#allocation0], 10
    %135 = vst.msk [vmem:[%s134] sm:$0xc0] %vm130, %v129
    %s136 = scalar_lea.vmem %s0, 66
    %v137 = vld [vmem:[%s136] sm:$0x1]
    %138 = vrot.lane.b32.xlu0 %v137, 32
    %v139 = vpop.permute.xlu0 %138
    %vm140 = vcmask 392448
    %s141 = scalar_lea.vmem [#allocation0], 18
    %142 = vst.msk [vmem:[%s141] sm:$0x1] %vm140, %v139
    %s143 = scalar_lea.vmem %s0, 1
    %v144 = vld [vmem:[%s143] ss:$8 sm:$0xf]
    %s145 = scalar_lea.vmem %s0, 1
    %v146 = vld [vmem:[%s145] ss:$8 sm:$0xf0]
    %vm147 = vcmask 1047556
    %v148 = vsel %vm147, %v146, %v144
    %149 = vrot.lane.b32.xlu0 %v148, 16
    %v150 = vpop.permute.xlu0 %149
    %vm151 = vcmask 261248
    %152 = vst.msk [vmem:[#allocation0] sm:$0x7] %vm151, %v150
    %s153 = scalar_lea.vmem [#allocation0], 5
    %154 = vst.msk [vmem:[%s153] sm:$0x38] %vm151, %v150
    %s155 = scalar_lea.vmem [#allocation0], 10
    %156 = vst.msk [vmem:[%s155] sm:$0xc0] %vm151, %v150
    %s157 = scalar_lea.vmem %s0, 65
    %v158 = vld [vmem:[%s157] sm:$0x1]
    %159 = vrot.lane.b32.xlu0 %v158, 16
    %v160 = vpop.permute.xlu0 %159
    %vm161 = vcmask 261248
    %s162 = scalar_lea.vmem [#allocation0], 18
    %163 = vst.msk [vmem:[%s162] sm:$0x1] %vm161, %v160
    %s165 = ssub.s32 16, 1
    %v166 = vld [vmem:[#allocation0] sm:%s165]
    %s168 = ssub.s32 16, 1
    %169 = vst [vmem:[%s1] sm:%s168] %v166
    %s170 = scalar_lea.vmem [#allocation0], 8
    %v171 = vld [vmem:[%s170] sm:%s165]
    %s173 = ssub.s32 16, 1
    %s174 = scalar_lea.vmem %s1, 4
    %175 = vst [vmem:[%s174] sm:%s173] %v171
    %s176 = scalar_lea.vmem [#allocation0], 16
    %v177 = vld [vmem:[%s176] sm:%s165]
    %s179 = ssub.s32 16, 1
    %s180 = scalar_lea.vmem %s1, 8
    %181 = vst [vmem:[%s180] sm:%s179] %v177

// kernel: tile.59
$region0: #{tile.59}
  #allocation0 [shape = 's32[1]{0}', space=sflag, size = 0x4, scoped, tag = 'scoped memory for tile.59']
  %s0 = inlined_call_operand.vmem [shape: f32[16], index: 0, kind: input, shape index: {}]
  %s1 = inlined_call_operand.vmem [shape: f32[8,16], index: 1, kind: output, shape index: {}]
  // Predicated region
  $region2: #{tile.59} parent=0 // pred_check
    _
  $region3: #{tile.59} parent=0 // pred_check_branch
    %3 = sbr.rel (0) target = $region5
  $region4: #{tile.59} parent=0 // pred_region
    _
  $region5: #{tile.59} parent=0 // pred_fallthru
    _
  %v4 = vld [vmem:[%s0] ss:$0 sm:$0xff]
  %5 = vst [vmem:[%s1] sm:$0xff] %v4

// kernel: cnn_jepa_predictor.1
$region0: #{cnn_jepa_predictor.1}
  #allocation0 [shape = 'u32[]', space=smem, size = 0x4, offset = 0x4, fixed_abs, tag = 'smem constant byte address 0x4 - core index']
  #allocation1 [shape = 'u32[72,128]{1,0:T(1,128)}', space=vmem, size = 0x9000, scoped, tag = 'internal scratch']
  #allocation2 [shape = 'f32[2,10,128]{2,1,0:T(8,128)}', space=vmem, size = 0x4000, scoped, tag = 'scratch operand']
  #allocation3 [shape = 'f32[2,10,128]{2,1,0:T(8,128)}', space=vmem, size = 0x4000, scoped, tag = 'scratch operand']
  #allocation4 [shape = 'f32[2,10,128]{2,1,0:T(8,128)}', space=vmem, size = 0x4000, scoped, tag = 'scratch operand']
  %s0 = inlined_call_operand.vmem [shape: f32[2,8,128], index: 0, kind: input, shape index: {}]
  %s1 = inlined_call_operand.vmem [shape: f32[4,3,3,128], index: 1, kind: input, shape index: {}]
  %s2 = inlined_call_operand.vmem [shape: bf16[4,128,128], index: 2, kind: input, shape index: {}]
  %s3 = inlined_call_operand.vmem [shape: f32[4,2,128], index: 3, kind: input, shape index: {}]
  %s4 = inlined_call_operand.vmem [shape: f32[16,128], index: 4, kind: output, shape index: {}]
  %s5 = sld [smem:[#allocation0]]
  $region26: #{cnn_jepa_predictor.1} parent=0
    _
  %s7 = ssub.s32 1, %s5
  %s8 = scalar_select 0, %s7, %s5
  // Predicated region
  $region2: #{cnn_jepa_predictor.1} parent=0 // pred_check
    _
  $region3: #{cnn_jepa_predictor.1} parent=0 // pred_check_branch
    %10 = sbr.rel (0) target = $region5
  $region4: #{cnn_jepa_predictor.1} parent=0 // pred_region
    _
  $region5: #{cnn_jepa_predictor.1} parent=0 // pred_fallthru
    _
  // Predicated region
  $region6: #{cnn_jepa_predictor.1} parent=0 // pred_check
    _
  $region7: #{cnn_jepa_predictor.1} parent=0 // pred_check_branch
    %12 = sbr.rel (0) target = $region9
  $region8: #{cnn_jepa_predictor.1} parent=0 // pred_region
    _
  $region9: #{cnn_jepa_predictor.1} parent=0 // pred_fallthru
    _
  // Predicated region
  $region10: #{cnn_jepa_predictor.1} parent=0 // pred_check
    _
  $region11: #{cnn_jepa_predictor.1} parent=0 // pred_check_branch
    %14 = sbr.rel (0) target = $region13
  $region12: #{cnn_jepa_predictor.1} parent=0 // pred_region
    _
  $region13: #{cnn_jepa_predictor.1} parent=0 // pred_fallthru
    _
  // Predicated region
  $region14: #{cnn_jepa_predictor.1} parent=0 // pred_check
    _
  $region15: #{cnn_jepa_predictor.1} parent=0 // pred_check_branch
    %16 = sbr.rel (0) target = $region17
  $region16: #{cnn_jepa_predictor.1} parent=0 // pred_region
    _
  $region17: #{cnn_jepa_predictor.1} parent=0 // pred_fallthru
    _
  %17 = vst [vmem:[#allocation2] sm:$0x1] 0.0
  %18 = vst [vmem:[#allocation2 + $0x10] sm:$0x1] 0.0
  %19 = vst [vmem:[#allocation2 + $0x9] sm:$0x1] 0.0
  %20 = vst [vmem:[#allocation2 + $0x19] sm:$0x1] 0.0
  %v21 = vld [vmem:[%s0] sm:$0xff]
  %v22 = vld [vmem:[%s0 + $0x8] sm:$0xff]
  %23 = vst [vmem:[#allocation2 + $0x1] sm:$0xff] %v21
  %24 = vst [vmem:[#allocation2 + $0x11] sm:$0xff] %v22
  %v25 = vld [vmem:[%s1] sm:$0x7]
  %v26 = vld [vmem:[%s1 + $0x4] sm:$0x7]
  %v27 = vld [vmem:[%s1 + $0x8] sm:$0x7]
  %v28 = vld [vmem:[#allocation2] sm:$0xff]
  %v29 = vld [vmem:[#allocation2 + $0x8] sm:$0x3]
  %v30 = vld [vmem:[#allocation2 + $0x10] sm:$0xff]
  %v31 = vld [vmem:[#allocation2 + $0x18] sm:$0x3]
  %32 = vrot.lane.b32.xlu0 %v28, 16
  %v33 = vpop.permute.xlu0 %32
  %34 = vrot.lane.b32.xlu0 %v29, 16
  %v35 = vpop.permute.xlu0 %34
  %36 = vrot.lane.b32.xlu0 %v30, 16
  %v37 = vpop.permute.xlu0 %36
  %38 = vrot.lane.b32.xlu0 %v31, 16
  %v39 = vpop.permute.xlu0 %38
  %40 = vst [vmem:[#allocation3] sm:$0xff] %v33
  %41 = vst [vmem:[#allocation3 + $0x8] sm:$0x3] %v35
  %42 = vst [vmem:[#allocation3 + $0x10] sm:$0xff] %v37
  %43 = vst [vmem:[#allocation3 + $0x18] sm:$0x3] %v39
  %44 = vrot.lane.b32.xlu0 %v28, 112
  %v45 = vpop.permute.xlu0 %44
  %46 = vrot.lane.b32.xlu0 %v29, 112
  %v47 = vpop.permute.xlu0 %46
  %48 = vrot.lane.b32.xlu0 %v30, 112
  %v49 = vpop.permute.xlu0 %48
  %50 = vrot.lane.b32.xlu0 %v31, 112
  %v51 = vpop.permute.xlu0 %50
  %52 = vst [vmem:[#allocation4] sm:$0xff] %v45
  %53 = vst [vmem:[#allocation4 + $0x8] sm:$0x3] %v47
  %54 = vst [vmem:[#allocation4 + $0x10] sm:$0xff] %v49
  %55 = vst [vmem:[#allocation4 + $0x18] sm:$0x3] %v51
  %v56 = vld [vmem:[#allocation3] sm:$0xff]
  %v57 = vld [vmem:[#allocation3 + $0x10] sm:$0xff]
  %v58 = vperm.slane %v25, 0
  %v59 = vmul.f32 %v56, %v58
  %v60 = vmul.f32 %v57, %v58
  %v61 = vld [vmem:[#allocation2] sm:$0xff]
  %v62 = vld [vmem:[#allocation2 + $0x10] sm:$0xff]
  %v63 = vperm.slane %v25, 1
  %v64 = vmul.f32 %v61, %v63
  %v65 = vmul.f32 %v62, %v63
  %v66 = vadd.f32 %v59, %v64
  %v67 = vadd.f32 %v60, %v65
  %v68 = vld [vmem:[#allocation4] sm:$0xff]
  %v69 = vld [vmem:[#allocation4 + $0x10] sm:$0xff]
  %v70 = vperm.slane %v25, 2
  %v71 = vmul.f32 %v68, %v70
  %v72 = vmul.f32 %v69, %v70
  %v73 = vadd.f32 %v66, %v71
  %v74 = vadd.f32 %v67, %v72
  %v75 = vld [vmem:[#allocation3 + $0x1] sm:$0xff]
  %v76 = vld [vmem:[#allocation3 + $0x11] sm:$0xff]
  %v77 = vperm.slane %v26, 0
  %v78 = vmul.f32 %v75, %v77
  %v79 = vmul.f32 %v76, %v77
  %v80 = vld [vmem:[#allocation2 + $0x1] sm:$0xff]
  %v81 = vld [vmem:[#allocation2 + $0x11] sm:$0xff]
  %v82 = vperm.slane %v26, 1
  %v83 = vmul.f32 %v80, %v82
  %v84 = vmul.f32 %v81, %v82
  %v85 = vadd.f32 %v78, %v83
  %v86 = vadd.f32 %v79, %v84
  %v87 = vld [vmem:[#allocation4 + $0x1] sm:$0xff]
  %v88 = vld [vmem:[#allocation4 + $0x11] sm:$0xff]
  %v89 = vperm.slane %v26, 2
  %v90 = vmul.f32 %v87, %v89
  %v91 = vmul.f32 %v88, %v89
  %v92 = vadd.f32 %v85, %v90
  %v93 = vadd.f32 %v86, %v91
  %v94 = vadd.f32 %v73, %v92
  %v95 = vadd.f32 %v74, %v93
  %v96 = vld [vmem:[#allocation3 + $0x2] sm:$0xff]
  %v97 = vld [vmem:[#allocation3 + $0x12] sm:$0xff]
  %v98 = vperm.slane %v27, 0
  %v99 = vmul.f32 %v96, %v98
  %v100 = vmul.f32 %v97, %v98
  %v101 = vld [vmem:[#allocation2 + $0x2] sm:$0xff]
  %v102 = vld [vmem:[#allocation2 + $0x12] sm:$0xff]
  %v103 = vperm.slane %v27, 1
  %v104 = vmul.f32 %v101, %v103
  %v105 = vmul.f32 %v102, %v103
  %v106 = vadd.f32 %v99, %v104
  %v107 = vadd.f32 %v100, %v105
  %v108 = vld [vmem:[#allocation4 + $0x2] sm:$0xff]
  %v109 = vld [vmem:[#allocation4 + $0x12] sm:$0xff]
  %v110 = vperm.slane %v27, 2
  %v111 = vmul.f32 %v108, %v110
  %v112 = vmul.f32 %v109, %v110
  %v113 = vadd.f32 %v106, %v111
  %v114 = vadd.f32 %v107, %v112
  %v115 = vadd.f32 %v94, %v113
  %v116 = vadd.f32 %v95, %v114
  %v117 = vld [vmem:[%s2] sm:$0xf]
  %v118 = vld [vmem:[%s2 + $0x4] sm:$0xf]
  %v119 = vld [vmem:[%s2 + $0x8] sm:$0xf]
  %v120 = vld [vmem:[%s2 + $0xc] sm:$0xf]
  %v121 = vld [vmem:[%s2 + $0x10] sm:$0xf]
  %v122 = vld [vmem:[%s2 + $0x14] sm:$0xf]
  %v123 = vld [vmem:[%s2 + $0x18] sm:$0xf]
  %v124 = vld [vmem:[%s2 + $0x1c] sm:$0xf]
  %v125 = vld [vmem:[%s2 + $0x20] sm:$0xf]
  %v126 = vld [vmem:[%s2 + $0x24] sm:$0xf]
  %v127 = vld [vmem:[%s2 + $0x28] sm:$0xf]
  %v128 = vld [vmem:[%s2 + $0x2c] sm:$0xf]
  %v129 = vld [vmem:[%s2 + $0x30] sm:$0xf]
  %v130 = vld [vmem:[%s2 + $0x34] sm:$0xf]
  %v131 = vld [vmem:[%s2 + $0x38] sm:$0xf]
  %v132 = vld [vmem:[%s2 + $0x3c] sm:$0xf]
  %v133 = vpack.c.bf16 %v116, %v115
  %v150 = vunpack.c.l.b16 %v117
  %v151 = vunpack.c.l.b16 %v118
  %v152 = vunpack.c.l.b16 %v119
  %v153 = vunpack.c.l.b16 %v120
  %v154 = vunpack.c.l.b16 %v121
  %v155 = vunpack.c.l.b16 %v122
  %v156 = vunpack.c.l.b16 %v123
  %v157 = vunpack.c.l.b16 %v124
  %v158 = vunpack.c.l.b16 %v125
  %v159 = vunpack.c.l.b16 %v126
  %v160 = vunpack.c.l.b16 %v127
  %v161 = vunpack.c.l.b16 %v128
  %v162 = vunpack.c.l.b16 %v129
  %v163 = vunpack.c.l.b16 %v130
  %v164 = vunpack.c.l.b16 %v131
  %v165 = vunpack.c.l.b16 %v132
  %v166 = vpack.c.b16 %v151, %v150
  %v167 = vpack.c.b16 %v153, %v152
  %v168 = vpack.c.b16 %v155, %v154
  %v169 = vpack.c.b16 %v157, %v156
  %v170 = vpack.c.b16 %v159, %v158
  %v171 = vpack.c.b16 %v161, %v160
  %v172 = vpack.c.b16 %v163, %v162
  %v173 = vpack.c.b16 %v165, %v164
  %182 = vmatpush.bf16.msra.mxu0 %v173
  %183 = vmatpush.bf16.msra.mxu0 %v172
  %184 = vmatpush.bf16.msra.mxu0 %v171
  %185 = vmatpush.bf16.msra.mxu0 %v170
  %186 = vmatpush.bf16.msra.mxu0 %v169
  %187 = vmatpush.bf16.msra.mxu0 %v168
  %188 = vmatpush.bf16.msra.mxu0 %v167
  %189 = vmatpush.bf16.msra.mxu0 %v166
  %190 = vmatmul.bf16.gmra.mxu0 %v133
  %v191 = vpop.f32.mrf.mxu0
  %v192 = vadd.f32 0.0, %v191
  %v193 = vpop.f32.mrf.mxu0
  %v194 = vadd.f32 0.0, %v193
  %195 = vdwg.mxu0
  %v196 = vadd.f32 %v192, %v194
  %v197 = vrot.slane %v196, 4
  %v198 = vadd.f32 %v196, %v197
  %v199 = vrot.slane %v198, 2
  %v200 = vadd.f32 %v198, %v199
  %v201 = vrot.slane %v200, 1
  %v202 = vadd.f32 %v200, %v201
  %v203 = vmul.f32 %v192, %v192
  %v204 = vmul.f32 %v194, %v194
  %v205 = vadd.f32 %v203, %v204
  %v206 = vrot.slane %v205, 4
  %v207 = vadd.f32 %v205, %v206
  %v208 = vrot.slane %v207, 2
  %v209 = vadd.f32 %v207, %v208
  %v210 = vrot.slane %v209, 1
  %v211 = vadd.f32 %v209, %v210
  %212 = vrot.lane.b32.xlu0 %v202, 16
  %v213 = vpop.permute.xlu0 %212
  %v214 = vadd.f32 %v202, %v213
  %215 = vrot.lane.b32.xlu0 %v214, 32
  %v216 = vpop.permute.xlu0 %215
  %v217 = vadd.f32 %v214, %v216
  %218 = vrot.lane.b32.xlu0 %v217, 64
  %v219 = vpop.permute.xlu0 %218
  %v220 = vadd.f32 %v217, %v219
  %221 = vrot.lane.b32.xlu0 %v211, 16
  %v222 = vpop.permute.xlu0 %221
  %v223 = vadd.f32 %v211, %v222
  %224 = vrot.lane.b32.xlu0 %v223, 32
  %v225 = vpop.permute.xlu0 %224
  %v226 = vadd.f32 %v223, %v225
  %227 = vrot.lane.b32.xlu0 %v226, 64
  %v228 = vpop.permute.xlu0 %227
  %v229 = vadd.f32 %v226, %v228
  %v230 = vmul.f32 %v220, 0.0078125
  %v231 = vmul.f32 %v229, 0.0078125
  %v232 = vmul.f32 %v230, %v230
  %v233 = vsub.f32 %v231, %v232
  %v234 = vld [vmem:[%s3] sm:$0x3]
  %v235 = vadd.f32 %v233, 1e-05
  %v236 = vrsqrt.pop %v235
  %v237 = vmul.f32 %v236, %v235
  %v238 = vmul.f32 %v237, %v236
  %v239 = vmul.f32 0.5, %v238
  %v240 = vsub.f32 1.5, %v239
  %v241 = vmul.f32 %v236, %v240
  %vm242 = vweird.f32 %v235
  %vm243 = vweird.f32 %v236
  %vm244 = vmor %vm242, %vm243
  %v245 = vsel %vm244, %v236, %v241
  %v246 = vmul.f32 %v234, %v245
  %v247 = vmul.f32 %v230, %v246
  %v249 = vrot.slane %v247, 7
  %v251 = vsub.f32 %v234, %v249
  %v252 = vperm.slane %v246, 0
  %v253 = vmul.f32 %v192, %v252
  %v254 = vmul.f32 %v194, %v252
  %v255 = vperm.slane %v251, 1
  %v256 = vadd.f32 %v253, %v255
  %v257 = vadd.f32 %v254, %v255
  %v258 = vmax.f32 %v256, 0.0
  %v259 = vmax.f32 %v257, 0.0
  %260 = vst [vmem:[#allocation2 + $0x1] sm:$0xff] %v258
  %261 = vst [vmem:[#allocation2 + $0x11] sm:$0xff] %v259
  %s262 = scalar_lea.vmem %s1, 12
  %v263 = vld [vmem:[%s262] sm:$0x7]
  %v264 = vld [vmem:[%s262 + $0x4] sm:$0x7]
  %v265 = vld [vmem:[%s262 + $0x8] sm:$0x7]
  %v266 = vld [vmem:[#allocation2] sm:$0xff]
  %v267 = vld [vmem:[#allocation2 + $0x8] sm:$0x3]
  %v268 = vld [vmem:[#allocation2 + $0x10] sm:$0xff]
  %v269 = vld [vmem:[#allocation2 + $0x18] sm:$0x3]
  %270 = vrot.lane.b32.xlu0 %v266, 16
  %v271 = vpop.permute.xlu0 %270
  %272 = vrot.lane.b32.xlu0 %v267, 16
  %v273 = vpop.permute.xlu0 %272
  %274 = vrot.lane.b32.xlu0 %v268, 16
  %v275 = vpop.permute.xlu0 %274
  %276 = vrot.lane.b32.xlu0 %v269, 16
  %v277 = vpop.permute.xlu0 %276
  %278 = vst [vmem:[#allocation3] sm:$0xff] %v271
  %279 = vst [vmem:[#allocation3 + $0x8] sm:$0x3] %v273
  %280 = vst [vmem:[#allocation3 + $0x10] sm:$0xff] %v275
  %281 = vst [vmem:[#allocation3 + $0x18] sm:$0x3] %v277
  %282 = vrot.lane.b32.xlu0 %v266, 112
  %v283 = vpop.permute.xlu0 %282
  %284 = vrot.lane.b32.xlu0 %v267, 112
  %v285 = vpop.permute.xlu0 %284
  %286 = vrot.lane.b32.xlu0 %v268, 112
  %v287 = vpop.permute.xlu0 %286
  %288 = vrot.lane.b32.xlu0 %v269, 112
  %v289 = vpop.permute.xlu0 %288
  %290 = vst [vmem:[#allocation4] sm:$0xff] %v283
  %291 = vst [vmem:[#allocation4 + $0x8] sm:$0x3] %v285
  %292 = vst [vmem:[#allocation4 + $0x10] sm:$0xff] %v287
  %293 = vst [vmem:[#allocation4 + $0x18] sm:$0x3] %v289
  %v294 = vld [vmem:[#allocation3] sm:$0xff]
  %v295 = vld [vmem:[#allocation3 + $0x10] sm:$0xff]
  %v296 = vperm.slane %v263, 0
  %v297 = vmul.f32 %v294, %v296
  %v298 = vmul.f32 %v295, %v296
  %v299 = vld [vmem:[#allocation2] sm:$0xff]
  %v300 = vld [vmem:[#allocation2 + $0x10] sm:$0xff]
  %v301 = vperm.slane %v263, 1
  %v302 = vmul.f32 %v299, %v301
  %v303 = vmul.f32 %v300, %v301
  %v304 = vadd.f32 %v297, %v302
  %v305 = vadd.f32 %v298, %v303
  %v306 = vld [vmem:[#allocation4] sm:$0xff]
  %v307 = vld [vmem:[#allocation4 + $0x10] sm:$0xff]
  %v308 = vperm.slane %v263, 2
  %v309 = vmul.f32 %v306, %v308
  %v310 = vmul.f32 %v307, %v308
  %v311 = vadd.f32 %v304, %v309
  %v312 = vadd.f32 %v305, %v310
  %v313 = vld [vmem:[#allocation3 + $0x1] sm:$0xff]
  %v314 = vld [vmem:[#allocation3 + $0x11] sm:$0xff]
  %v315 = vperm.slane %v264, 0
  %v316 = vmul.f32 %v313, %v315
  %v317 = vmul.f32 %v314, %v315
  %v318 = vld [vmem:[#allocation2 + $0x1] sm:$0xff]
  %v319 = vld [vmem:[#allocation2 + $0x11] sm:$0xff]
  %v320 = vperm.slane %v264, 1
  %v321 = vmul.f32 %v318, %v320
  %v322 = vmul.f32 %v319, %v320
  %v323 = vadd.f32 %v316, %v321
  %v324 = vadd.f32 %v317, %v322
  %v325 = vld [vmem:[#allocation4 + $0x1] sm:$0xff]
  %v326 = vld [vmem:[#allocation4 + $0x11] sm:$0xff]
  %v327 = vperm.slane %v264, 2
  %v328 = vmul.f32 %v325, %v327
  %v329 = vmul.f32 %v326, %v327
  %v330 = vadd.f32 %v323, %v328
  %v331 = vadd.f32 %v324, %v329
  %v332 = vadd.f32 %v311, %v330
  %v333 = vadd.f32 %v312, %v331
  %v334 = vld [vmem:[#allocation3 + $0x2] sm:$0xff]
  %v335 = vld [vmem:[#allocation3 + $0x12] sm:$0xff]
  %v336 = vperm.slane %v265, 0
  %v337 = vmul.f32 %v334, %v336
  %v338 = vmul.f32 %v335, %v336
  %v339 = vld [vmem:[#allocation2 + $0x2] sm:$0xff]
  %v340 = vld [vmem:[#allocation2 + $0x12] sm:$0xff]
  %v341 = vperm.slane %v265, 1
  %v342 = vmul.f32 %v339, %v341
  %v343 = vmul.f32 %v340, %v341
  %v344 = vadd.f32 %v337, %v342
  %v345 = vadd.f32 %v338, %v343
  %v346 = vld [vmem:[#allocation4 + $0x2] sm:$0xff]
  %v347 = vld [vmem:[#allocation4 + $0x12] sm:$0xff]
  %v348 = vperm.slane %v265, 2
  %v349 = vmul.f32 %v346, %v348
  %v350 = vmul.f32 %v347, %v348
  %v351 = vadd.f32 %v344, %v349
  %v352 = vadd.f32 %v345, %v350
  %v353 = vadd.f32 %v332, %v351
  %v354 = vadd.f32 %v333, %v352
  %s355 = scalar_lea.vmem %s2, 64
  %v356 = vld [vmem:[%s355] sm:$0xf]
  %v357 = vld [vmem:[%s355 + $0x4] sm:$0xf]
  %v358 = vld [vmem:[%s355 + $0x8] sm:$0xf]
  %v359 = vld [vmem:[%s355 + $0xc] sm:$0xf]
  %v360 = vld [vmem:[%s355 + $0x10] sm:$0xf]
  %v361 = vld [vmem:[%s355 + $0x14] sm:$0xf]
  %v362 = vld [vmem:[%s355 + $0x18] sm:$0xf]
  %v363 = vld [vmem:[%s355 + $0x1c] sm:$0xf]
  %v364 = vld [vmem:[%s355 + $0x20] sm:$0xf]
  %v365 = vld [vmem:[%s355 + $0x24] sm:$0xf]
  %v366 = vld [vmem:[%s355 + $0x28] sm:$0xf]
  %v367 = vld [vmem:[%s355 + $0x2c] sm:$0xf]
  %v368 = vld [vmem:[%s355 + $0x30] sm:$0xf]
  %v369 = vld [vmem:[%s355 + $0x34] sm:$0xf]
  %v370 = vld [vmem:[%s355 + $0x38] sm:$0xf]
  %v371 = vld [vmem:[%s355 + $0x3c] sm:$0xf]
  %v372 = vpack.c.bf16 %v354, %v353
  %v389 = vunpack.c.l.b16 %v356
  %v390 = vunpack.c.l.b16 %v357
  %v391 = vunpack.c.l.b16 %v358
  %v392 = vunpack.c.l.b16 %v359
  %v393 = vunpack.c.l.b16 %v360
  %v394 = vunpack.c.l.b16 %v361
  %v395 = vunpack.c.l.b16 %v362
  %v396 = vunpack.c.l.b16 %v363
  %v397 = vunpack.c.l.b16 %v364
  %v398 = vunpack.c.l.b16 %v365
  %v399 = vunpack.c.l.b16 %v366
  %v400 = vunpack.c.l.b16 %v367
  %v401 = vunpack.c.l.b16 %v368
  %v402 = vunpack.c.l.b16 %v369
  %v403 = vunpack.c.l.b16 %v370
  %v404 = vunpack.c.l.b16 %v371
  %v405 = vpack.c.b16 %v390, %v389
  %v406 = vpack.c.b16 %v392, %v391
  %v407 = vpack.c.b16 %v394, %v393
  %v408 = vpack.c.b16 %v396, %v395
  %v409 = vpack.c.b16 %v398, %v397
  %v410 = vpack.c.b16 %v400, %v399
  %v411 = vpack.c.b16 %v402, %v401
  %v412 = vpack.c.b16 %v404, %v403
  %421 = vmatpush.bf16.msra.mxu0 %v412
  %422 = vmatpush.bf16.msra.mxu0 %v411
  %423 = vmatpush.bf16.msra.mxu0 %v410
  %424 = vmatpush.bf16.msra.mxu0 %v409
  %425 = vmatpush.bf16.msra.mxu0 %v408
  %426 = vmatpush.bf16.msra.mxu0 %v407
  %427 = vmatpush.bf16.msra.mxu0 %v406
  %428 = vmatpush.bf16.msra.mxu0 %v405
  %429 = vmatmul.bf16.gmra.mxu0 %v372
  %v430 = vpop.f32.mrf.mxu0
  %v431 = vadd.f32 0.0, %v430
  %v432 = vpop.f32.mrf.mxu0
  %v433 = vadd.f32 0.0, %v432
  %434 = vdwg.mxu0
  %v435 = vadd.f32 %v431, %v433
  %v436 = vrot.slane %v435, 4
  %v437 = vadd.f32 %v435, %v436
  %v438 = vrot.slane %v437, 2
  %v439 = vadd.f32 %v437, %v438
  %v440 = vrot.slane %v439, 1
  %v441 = vadd.f32 %v439, %v440
  %v442 = vmul.f32 %v431, %v431
  %v443 = vmul.f32 %v433, %v433
  %v444 = vadd.f32 %v442, %v443
  %v445 = vrot.slane %v444, 4
  %v446 = vadd.f32 %v444, %v445
  %v447 = vrot.slane %v446, 2
  %v448 = vadd.f32 %v446, %v447
  %v449 = vrot.slane %v448, 1
  %v450 = vadd.f32 %v448, %v449
  %451 = vrot.lane.b32.xlu0 %v441, 16
  %v452 = vpop.permute.xlu0 %451
  %v453 = vadd.f32 %v441, %v452
  %454 = vrot.lane.b32.xlu0 %v453, 32
  %v455 = vpop.permute.xlu0 %454
  %v456 = vadd.f32 %v453, %v455
  %457 = vrot.lane.b32.xlu0 %v456, 64
  %v458 = vpop.permute.xlu0 %457
  %v459 = vadd.f32 %v456, %v458
  %460 = vrot.lane.b32.xlu0 %v450, 16
  %v461 = vpop.permute.xlu0 %460
  %v462 = vadd.f32 %v450, %v461
  %463 = vrot.lane.b32.xlu0 %v462, 32
  %v464 = vpop.permute.xlu0 %463
  %v465 = vadd.f32 %v462, %v464
  %466 = vrot.lane.b32.xlu0 %v465, 64
  %v467 = vpop.permute.xlu0 %466
  %v468 = vadd.f32 %v465, %v467
  %v469 = vmul.f32 %v459, 0.0078125
  %v470 = vmul.f32 %v468, 0.0078125
  %v471 = vmul.f32 %v469, %v469
  %v472 = vsub.f32 %v470, %v471
  %s473 = scalar_lea.vmem %s3, 2
  %v474 = vld [vmem:[%s473] sm:$0x3]
  %v475 = vadd.f32 %v472, 1e-05
  %v476 = vrsqrt.pop %v475
  %v477 = vmul.f32 %v476, %v475
  %v478 = vmul.f32 %v477, %v476
  %v479 = vmul.f32 0.5, %v478
  %v480 = vsub.f32 1.5, %v479
  %v481 = vmul.f32 %v476, %v480
  %vm482 = vweird.f32 %v475
  %vm483 = vweird.f32 %v476
  %vm484 = vmor %vm482, %vm483
  %v485 = vsel %vm484, %v476, %v481
  %v486 = vmul.f32 %v474, %v485
  %v487 = vmul.f32 %v469, %v486
  %v489 = vrot.slane %v487, 7
  %v491 = vsub.f32 %v474, %v489
  %v492 = vperm.slane %v486, 0
  %v493 = vmul.f32 %v431, %v492
  %v494 = vmul.f32 %v433, %v492
  %v495 = vperm.slane %v491, 1
  %v496 = vadd.f32 %v493, %v495
  %v497 = vadd.f32 %v494, %v495
  %v498 = vmax.f32 %v496, 0.0
  %v499 = vmax.f32 %v497, 0.0
  %500 = vst [vmem:[#allocation2 + $0x1] sm:$0xff] %v498
  %501 = vst [vmem:[#allocation2 + $0x11] sm:$0xff] %v499
  %s502 = scalar_lea.vmem %s1, 24
  %v503 = vld [vmem:[%s502] sm:$0x7]
  %v504 = vld [vmem:[%s502 + $0x4] sm:$0x7]
  %v505 = vld [vmem:[%s502 + $0x8] sm:$0x7]
  %v506 = vld [vmem:[#allocation2] sm:$0xff]
  %v507 = vld [vmem:[#allocation2 + $0x8] sm:$0x3]
  %v508 = vld [vmem:[#allocation2 + $0x10] sm:$0xff]
  %v509 = vld [vmem:[#allocation2 + $0x18] sm:$0x3]
  %510 = vrot.lane.b32.xlu0 %v506, 16
  %v511 = vpop.permute.xlu0 %510
  %512 = vrot.lane.b32.xlu0 %v507, 16
  %v513 = vpop.permute.xlu0 %512
  %514 = vrot.lane.b32.xlu0 %v508, 16
  %v515 = vpop.permute.xlu0 %514
  %516 = vrot.lane.b32.xlu0 %v509, 16
  %v517 = vpop.permute.xlu0 %516
  %518 = vst [vmem:[#allocation3] sm:$0xff] %v511
  %519 = vst [vmem:[#allocation3 + $0x8] sm:$0x3] %v513
  %520 = vst [vmem:[#allocation3 + $0x10] sm:$0xff] %v515
  %521 = vst [vmem:[#allocation3 + $0x18] sm:$0x3] %v517
  %522 = vrot.lane.b32.xlu0 %v506, 112
  %v523 = vpop.permute.xlu0 %522
  %524 = vrot.lane.b32.xlu0 %v507, 112
  %v525 = vpop.permute.xlu0 %524
  %526 = vrot.lane.b32.xlu0 %v508, 112
  %v527 = vpop.permute.xlu0 %526
  %528 = vrot.lane.b32.xlu0 %v509, 112
  %v529 = vpop.permute.xlu0 %528
  %530 = vst [vmem:[#allocation4] sm:$0xff] %v523
  %531 = vst [vmem:[#allocation4 + $0x8] sm:$0x3] %v525
  %532 = vst [vmem:[#allocation4 + $0x10] sm:$0xff] %v527
  %533 = vst [vmem:[#allocation4 + $0x18] sm:$0x3] %v529
  %v534 = vld [vmem:[#allocation3] sm:$0xff]
  %v535 = vld [vmem:[#allocation3 + $0x10] sm:$0xff]
  %v536 = vperm.slane %v503, 0
  %v537 = vmul.f32 %v534, %v536
  %v538 = vmul.f32 %v535, %v536
  %v539 = vld [vmem:[#allocation2] sm:$0xff]
  %v540 = vld [vmem:[#allocation2 + $0x10] sm:$0xff]
  %v541 = vperm.slane %v503, 1
  %v542 = vmul.f32 %v539, %v541
  %v543 = vmul.f32 %v540, %v541
  %v544 = vadd.f32 %v537, %v542
  %v545 = vadd.f32 %v538, %v543
  %v546 = vld [vmem:[#allocation4] sm:$0xff]
  %v547 = vld [vmem:[#allocation4 + $0x10] sm:$0xff]
  %v548 = vperm.slane %v503, 2
  %v549 = vmul.f32 %v546, %v548
  %v550 = vmul.f32 %v547, %v548
  %v551 = vadd.f32 %v544, %v549
  %v552 = vadd.f32 %v545, %v550
  %v553 = vld [vmem:[#allocation3 + $0x1] sm:$0xff]
  %v554 = vld [vmem:[#allocation3 + $0x11] sm:$0xff]
  %v555 = vperm.slane %v504, 0
  %v556 = vmul.f32 %v553, %v555
  %v557 = vmul.f32 %v554, %v555
  %v558 = vld [vmem:[#allocation2 + $0x1] sm:$0xff]
  %v559 = vld [vmem:[#allocation2 + $0x11] sm:$0xff]
  %v560 = vperm.slane %v504, 1
  %v561 = vmul.f32 %v558, %v560
  %v562 = vmul.f32 %v559, %v560
  %v563 = vadd.f32 %v556, %v561
  %v564 = vadd.f32 %v557, %v562
  %v565 = vld [vmem:[#allocation4 + $0x1] sm:$0xff]
  %v566 = vld [vmem:[#allocation4 + $0x11] sm:$0xff]
  %v567 = vperm.slane %v504, 2
  %v568 = vmul.f32 %v565, %v567
  %v569 = vmul.f32 %v566, %v567
  %v570 = vadd.f32 %v563, %v568
  %v571 = vadd.f32 %v564, %v569
  %v572 = vadd.f32 %v551, %v570
  %v573 = vadd.f32 %v552, %v571
  %v574 = vld [vmem:[#allocation3 + $0x2] sm:$0xff]
  %v575 = vld [vmem:[#allocation3 + $0x12] sm:$0xff]
  %v576 = vperm.slane %v505, 0
  %v577 = vmul.f32 %v574, %v576
  %v578 = vmul.f32 %v575, %v576
  %v579 = vld [vmem:[#allocation2 + $0x2] sm:$0xff]
  %v580 = vld [vmem:[#allocation2 + $0x12] sm:$0xff]
  %v581 = vperm.slane %v505, 1
  %v582 = vmul.f32 %v579, %v581
  %v583 = vmul.f32 %v580, %v581
  %v584 = vadd.f32 %v577, %v582
  %v585 = vadd.f32 %v578, %v583
  %v586 = vld [vmem:[#allocation4 + $0x2] sm:$0xff]
  %v587 = vld [vmem:[#allocation4 + $0x12] sm:$0xff]
  %v588 = vperm.slane %v505, 2
  %v589 = vmul.f32 %v586, %v588
  %v590 = vmul.f32 %v587, %v588
  %v591 = vadd.f32 %v584, %v589
  %v592 = vadd.f32 %v585, %v590
  %v593 = vadd.f32 %v572, %v591
  %v594 = vadd.f32 %v573, %v592
  %s595 = scalar_lea.vmem %s2, 128
  %v596 = vld [vmem:[%s595] sm:$0xf]
  %v597 = vld [vmem:[%s595 + $0x4] sm:$0xf]
  %v598 = vld [vmem:[%s595 + $0x8] sm:$0xf]
  %v599 = vld [vmem:[%s595 + $0xc] sm:$0xf]
  %v600 = vld [vmem:[%s595 + $0x10] sm:$0xf]
  %v601 = vld [vmem:[%s595 + $0x14] sm:$0xf]
  %v602 = vld [vmem:[%s595 + $0x18] sm:$0xf]
  %v603 = vld [vmem:[%s595 + $0x1c] sm:$0xf]
  %v604 = vld [vmem:[%s595 + $0x20] sm:$0xf]
  %v605 = vld [vmem:[%s595 + $0x24] sm:$0xf]
  %v606 = vld [vmem:[%s595 + $0x28] sm:$0xf]
  %v607 = vld [vmem:[%s595 + $0x2c] sm:$0xf]
  %v608 = vld [vmem:[%s595 + $0x30] sm:$0xf]
  %v609 = vld [vmem:[%s595 + $0x34] sm:$0xf]
  %v610 = vld [vmem:[%s595 + $0x38] sm:$0xf]
  %v611 = vld [vmem:[%s595 + $0x3c] sm:$0xf]
  %v612 = vpack.c.bf16 %v594, %v593
  %v629 = vunpack.c.l.b16 %v596
  %v630 = vunpack.c.l.b16 %v597
  %v631 = vunpack.c.l.b16 %v598
  %v632 = vunpack.c.l.b16 %v599
  %v633 = vunpack.c.l.b16 %v600
  %v634 = vunpack.c.l.b16 %v601
  %v635 = vunpack.c.l.b16 %v602
  %v636 = vunpack.c.l.b16 %v603
  %v637 = vunpack.c.l.b16 %v604
  %v638 = vunpack.c.l.b16 %v605
  %v639 = vunpack.c.l.b16 %v606
  %v640 = vunpack.c.l.b16 %v607
  %v641 = vunpack.c.l.b16 %v608
  %v642 = vunpack.c.l.b16 %v609
  %v643 = vunpack.c.l.b16 %v610
  %v644 = vunpack.c.l.b16 %v611
  %v645 = vpack.c.b16 %v630, %v629
  %v646 = vpack.c.b16 %v632, %v631
  %v647 = vpack.c.b16 %v634, %v633
  %v648 = vpack.c.b16 %v636, %v635
  %v649 = vpack.c.b16 %v638, %v637
  %v650 = vpack.c.b16 %v640, %v639
  %v651 = vpack.c.b16 %v642, %v641
  %v652 = vpack.c.b16 %v644, %v643
  %661 = vmatpush.bf16.msra.mxu0 %v652
  %662 = vmatpush.bf16.msra.mxu0 %v651
  %663 = vmatpush.bf16.msra.mxu0 %v650
  %664 = vmatpush.bf16.msra.mxu0 %v649
  %665 = vmatpush.bf16.msra.mxu0 %v648
  %666 = vmatpush.bf16.msra.mxu0 %v647
  %667 = vmatpush.bf16.msra.mxu0 %v646
  %668 = vmatpush.bf16.msra.mxu0 %v645
  %669 = vmatmul.bf16.gmra.mxu0 %v612
  %v670 = vpop.f32.mrf.mxu0
  %v671 = vadd.f32 0.0, %v670
  %v672 = vpop.f32.mrf.mxu0
  %v673 = vadd.f32 0.0, %v672
  %674 = vdwg.mxu0
  %v675 = vadd.f32 %v671, %v673
  %v676 = vrot.slane %v675, 4
  %v677 = vadd.f32 %v675, %v676
  %v678 = vrot.slane %v677, 2
  %v679 = vadd.f32 %v677, %v678
  %v680 = vrot.slane %v679, 1
  %v681 = vadd.f32 %v679, %v680
  %v682 = vmul.f32 %v671, %v671
  %v683 = vmul.f32 %v673, %v673
  %v684 = vadd.f32 %v682, %v683
  %v685 = vrot.slane %v684, 4
  %v686 = vadd.f32 %v684, %v685
  %v687 = vrot.slane %v686, 2
  %v688 = vadd.f32 %v686, %v687
  %v689 = vrot.slane %v688, 1
  %v690 = vadd.f32 %v688, %v689
  %691 = vrot.lane.b32.xlu0 %v681, 16
  %v692 = vpop.permute.xlu0 %691
  %v693 = vadd.f32 %v681, %v692
  %694 = vrot.lane.b32.xlu0 %v693, 32
  %v695 = vpop.permute.xlu0 %694
  %v696 = vadd.f32 %v693, %v695
  %697 = vrot.lane.b32.xlu0 %v696, 64
  %v698 = vpop.permute.xlu0 %697
  %v699 = vadd.f32 %v696, %v698
  %700 = vrot.lane.b32.xlu0 %v690, 16
  %v701 = vpop.permute.xlu0 %700
  %v702 = vadd.f32 %v690, %v701
  %703 = vrot.lane.b32.xlu0 %v702, 32
  %v704 = vpop.permute.xlu0 %703
  %v705 = vadd.f32 %v702, %v704
  %706 = vrot.lane.b32.xlu0 %v705, 64
  %v707 = vpop.permute.xlu0 %706
  %v708 = vadd.f32 %v705, %v707
  %v709 = vmul.f32 %v699, 0.0078125
  %v710 = vmul.f32 %v708, 0.0078125
  %v711 = vmul.f32 %v709, %v709
  %v712 = vsub.f32 %v710, %v711
  %s713 = scalar_lea.vmem %s3, 4
  %v714 = vld [vmem:[%s713] sm:$0x3]
  %v715 = vadd.f32 %v712, 1e-05
  %v716 = vrsqrt.pop %v715
  %v717 = vmul.f32 %v716, %v715
  %v718 = vmul.f32 %v717, %v716
  %v719 = vmul.f32 0.5, %v718
  %v720 = vsub.f32 1.5, %v719
  %v721 = vmul.f32 %v716, %v720
  %vm722 = vweird.f32 %v715
  %vm723 = vweird.f32 %v716
  %vm724 = vmor %vm722, %vm723
  %v725 = vsel %vm724, %v716, %v721
  %v726 = vmul.f32 %v714, %v725
  %v727 = vmul.f32 %v709, %v726
  %v729 = vrot.slane %v727, 7
  %v731 = vsub.f32 %v714, %v729
  %v732 = vperm.slane %v726, 0
  %v733 = vmul.f32 %v671, %v732
  %v734 = vmul.f32 %v673, %v732
  %v735 = vperm.slane %v731, 1
  %v736 = vadd.f32 %v733, %v735
  %v737 = vadd.f32 %v734, %v735
  %v738 = vmax.f32 %v736, 0.0
  %v739 = vmax.f32 %v737, 0.0
  %740 = vst [vmem:[#allocation2 + $0x1] sm:$0xff] %v738
  %741 = vst [vmem:[#allocation2 + $0x11] sm:$0xff] %v739
  %s742 = scalar_lea.vmem %s1, 36
  %v743 = vld [vmem:[%s742] sm:$0x7]
  %v744 = vld [vmem:[%s742 + $0x4] sm:$0x7]
  %v745 = vld [vmem:[%s742 + $0x8] sm:$0x7]
  %v746 = vld [vmem:[#allocation2] sm:$0xff]
  %v747 = vld [vmem:[#allocation2 + $0x8] sm:$0x3]
  %v748 = vld [vmem:[#allocation2 + $0x10] sm:$0xff]
  %v749 = vld [vmem:[#allocation2 + $0x18] sm:$0x3]
  %750 = vrot.lane.b32.xlu0 %v746, 16
  %v751 = vpop.permute.xlu0 %750
  %752 = vrot.lane.b32.xlu0 %v747, 16
  %v753 = vpop.permute.xlu0 %752
  %754 = vrot.lane.b32.xlu0 %v748, 16
  %v755 = vpop.permute.xlu0 %754
  %756 = vrot.lane.b32.xlu0 %v749, 16
  %v757 = vpop.permute.xlu0 %756
  %758 = vst [vmem:[#allocation3] sm:$0xff] %v751
  %759 = vst [vmem:[#allocation3 + $0x8] sm:$0x3] %v753
  %760 = vst [vmem:[#allocation3 + $0x10] sm:$0xff] %v755
  %761 = vst [vmem:[#allocation3 + $0x18] sm:$0x3] %v757
  %762 = vrot.lane.b32.xlu0 %v746, 112
  %v763 = vpop.permute.xlu0 %762
  %764 = vrot.lane.b32.xlu0 %v747, 112
  %v765 = vpop.permute.xlu0 %764
  %766 = vrot.lane.b32.xlu0 %v748, 112
  %v767 = vpop.permute.xlu0 %766
  %768 = vrot.lane.b32.xlu0 %v749, 112
  %v769 = vpop.permute.xlu0 %768
  %770 = vst [vmem:[#allocation4] sm:$0xff] %v763
  %771 = vst [vmem:[#allocation4 + $0x8] sm:$0x3] %v765
  %772 = vst [vmem:[#allocation4 + $0x10] sm:$0xff] %v767
  %773 = vst [vmem:[#allocation4 + $0x18] sm:$0x3] %v769
  %v774 = vld [vmem:[#allocation3] sm:$0xff]
  %v775 = vld [vmem:[#allocation3 + $0x10] sm:$0xff]
  %v776 = vperm.slane %v743, 0
  %v777 = vmul.f32 %v774, %v776
  %v778 = vmul.f32 %v775, %v776
  %v779 = vld [vmem:[#allocation2] sm:$0xff]
  %v780 = vld [vmem:[#allocation2 + $0x10] sm:$0xff]
  %v781 = vperm.slane %v743, 1
  %v782 = vmul.f32 %v779, %v781
  %v783 = vmul.f32 %v780, %v781
  %v784 = vadd.f32 %v777, %v782
  %v785 = vadd.f32 %v778, %v783
  %v786 = vld [vmem:[#allocation4] sm:$0xff]
  %v787 = vld [vmem:[#allocation4 + $0x10] sm:$0xff]
  %v788 = vperm.slane %v743, 2
  %v789 = vmul.f32 %v786, %v788
  %v790 = vmul.f32 %v787, %v788
  %v791 = vadd.f32 %v784, %v789
  %v792 = vadd.f32 %v785, %v790
  %v793 = vld [vmem:[#allocation3 + $0x1] sm:$0xff]
  %v794 = vld [vmem:[#allocation3 + $0x11] sm:$0xff]
  %v795 = vperm.slane %v744, 0
  %v796 = vmul.f32 %v793, %v795
  %v797 = vmul.f32 %v794, %v795
  %v798 = vld [vmem:[#allocation2 + $0x1] sm:$0xff]
  %v799 = vld [vmem:[#allocation2 + $0x11] sm:$0xff]
  %v800 = vperm.slane %v744, 1
  %v801 = vmul.f32 %v798, %v800
  %v802 = vmul.f32 %v799, %v800
  %v803 = vadd.f32 %v796, %v801
  %v804 = vadd.f32 %v797, %v802
  %v805 = vld [vmem:[#allocation4 + $0x1] sm:$0xff]
  %v806 = vld [vmem:[#allocation4 + $0x11] sm:$0xff]
  %v807 = vperm.slane %v744, 2
  %v808 = vmul.f32 %v805, %v807
  %v809 = vmul.f32 %v806, %v807
  %v810 = vadd.f32 %v803, %v808
  %v811 = vadd.f32 %v804, %v809
  %v812 = vadd.f32 %v791, %v810
  %v813 = vadd.f32 %v792, %v811
  %v814 = vld [vmem:[#allocation3 + $0x2] sm:$0xff]
  %v815 = vld [vmem:[#allocation3 + $0x12] sm:$0xff]
  %v816 = vperm.slane %v745, 0
  %v817 = vmul.f32 %v814, %v816
  %v818 = vmul.f32 %v815, %v816
  %v819 = vld [vmem:[#allocation2 + $0x2] sm:$0xff]
  %v820 = vld [vmem:[#allocation2 + $0x12] sm:$0xff]
  %v821 = vperm.slane %v745, 1
  %v822 = vmul.f32 %v819, %v821
  %v823 = vmul.f32 %v820, %v821
  %v824 = vadd.f32 %v817, %v822
  %v825 = vadd.f32 %v818, %v823
  %v826 = vld [vmem:[#allocation4 + $0x2] sm:$0xff]
  %v827 = vld [vmem:[#allocation4 + $0x12] sm:$0xff]
  %v828 = vperm.slane %v745, 2
  %v829 = vmul.f32 %v826, %v828
  %v830 = vmul.f32 %v827, %v828
  %v831 = vadd.f32 %v824, %v829
  %v832 = vadd.f32 %v825, %v830
  %v833 = vadd.f32 %v812, %v831
  %v834 = vadd.f32 %v813, %v832
  %s835 = scalar_lea.vmem %s2, 192
  %v836 = vld [vmem:[%s835] sm:$0xf]
  %v837 = vld [vmem:[%s835 + $0x4] sm:$0xf]
  %v838 = vld [vmem:[%s835 + $0x8] sm:$0xf]
  %v839 = vld [vmem:[%s835 + $0xc] sm:$0xf]
  %v840 = vld [vmem:[%s835 + $0x10] sm:$0xf]
  %v841 = vld [vmem:[%s835 + $0x14] sm:$0xf]
  %v842 = vld [vmem:[%s835 + $0x18] sm:$0xf]
  %v843 = vld [vmem:[%s835 + $0x1c] sm:$0xf]
  %v844 = vld [vmem:[%s835 + $0x20] sm:$0xf]
  %v845 = vld [vmem:[%s835 + $0x24] sm:$0xf]
  %v846 = vld [vmem:[%s835 + $0x28] sm:$0xf]
  %v847 = vld [vmem:[%s835 + $0x2c] sm:$0xf]
  %v848 = vld [vmem:[%s835 + $0x30] sm:$0xf]
  %v849 = vld [vmem:[%s835 + $0x34] sm:$0xf]
  %v850 = vld [vmem:[%s835 + $0x38] sm:$0xf]
  %v851 = vld [vmem:[%s835 + $0x3c] sm:$0xf]
  %v852 = vpack.c.bf16 %v834, %v833
  %v869 = vunpack.c.l.b16 %v836
  %v870 = vunpack.c.l.b16 %v837
  %v871 = vunpack.c.l.b16 %v838
  %v872 = vunpack.c.l.b16 %v839
  %v873 = vunpack.c.l.b16 %v840
  %v874 = vunpack.c.l.b16 %v841
  %v875 = vunpack.c.l.b16 %v842
  %v876 = vunpack.c.l.b16 %v843
  %v877 = vunpack.c.l.b16 %v844
  %v878 = vunpack.c.l.b16 %v845
  %v879 = vunpack.c.l.b16 %v846
  %v880 = vunpack.c.l.b16 %v847
  %v881 = vunpack.c.l.b16 %v848
  %v882 = vunpack.c.l.b16 %v849
  %v883 = vunpack.c.l.b16 %v850
  %v884 = vunpack.c.l.b16 %v851
  %v885 = vpack.c.b16 %v870, %v869
  %v886 = vpack.c.b16 %v872, %v871
  %v887 = vpack.c.b16 %v874, %v873
  %v888 = vpack.c.b16 %v876, %v875
  %v889 = vpack.c.b16 %v878, %v877
  %v890 = vpack.c.b16 %v880, %v879
  %v891 = vpack.c.b16 %v882, %v881
  %v892 = vpack.c.b16 %v884, %v883
  %901 = vmatpush.bf16.msra.mxu0 %v892
  %902 = vmatpush.bf16.msra.mxu0 %v891
  %903 = vmatpush.bf16.msra.mxu0 %v890
  %904 = vmatpush.bf16.msra.mxu0 %v889
  %905 = vmatpush.bf16.msra.mxu0 %v888
  %906 = vmatpush.bf16.msra.mxu0 %v887
  %907 = vmatpush.bf16.msra.mxu0 %v886
  %908 = vmatpush.bf16.msra.mxu0 %v885
  %909 = vmatmul.bf16.gmra.mxu0 %v852
  %v910 = vpop.f32.mrf.mxu0
  %v911 = vadd.f32 0.0, %v910
  %v912 = vpop.f32.mrf.mxu0
  %v913 = vadd.f32 0.0, %v912
  %914 = vdwg.mxu0
  %v915 = vadd.f32 %v911, %v913
  %v916 = vrot.slane %v915, 4
  %v917 = vadd.f32 %v915, %v916
  %v918 = vrot.slane %v917, 2
  %v919 = vadd.f32 %v917, %v918
  %v920 = vrot.slane %v919, 1
  %v921 = vadd.f32 %v919, %v920
  %v922 = vmul.f32 %v911, %v911
  %v923 = vmul.f32 %v913, %v913
  %v924 = vadd.f32 %v922, %v923
  %v925 = vrot.slane %v924, 4
  %v926 = vadd.f32 %v924, %v925
  %v927 = vrot.slane %v926, 2
  %v928 = vadd.f32 %v926, %v927
  %v929 = vrot.slane %v928, 1
  %v930 = vadd.f32 %v928, %v929
  %931 = vrot.lane.b32.xlu0 %v921, 16
  %v932 = vpop.permute.xlu0 %931
  %v933 = vadd.f32 %v921, %v932
  %934 = vrot.lane.b32.xlu0 %v933, 32
  %v935 = vpop.permute.xlu0 %934
  %v936 = vadd.f32 %v933, %v935
  %937 = vrot.lane.b32.xlu0 %v936, 64
  %v938 = vpop.permute.xlu0 %937
  %v939 = vadd.f32 %v936, %v938
  %940 = vrot.lane.b32.xlu0 %v930, 16
  %v941 = vpop.permute.xlu0 %940
  %v942 = vadd.f32 %v930, %v941
  %943 = vrot.lane.b32.xlu0 %v942, 32
  %v944 = vpop.permute.xlu0 %943
  %v945 = vadd.f32 %v942, %v944
  %946 = vrot.lane.b32.xlu0 %v945, 64
  %v947 = vpop.permute.xlu0 %946
  %v948 = vadd.f32 %v945, %v947
  %v949 = vmul.f32 %v939, 0.0078125
  %v950 = vmul.f32 %v948, 0.0078125
  %v951 = vmul.f32 %v949, %v949
  %v952 = vsub.f32 %v950, %v951
  %s953 = scalar_lea.vmem %s3, 6
  %v954 = vld [vmem:[%s953] sm:$0x3]
  %v955 = vadd.f32 %v952, 1e-05
  %v956 = vrsqrt.pop %v955
  %v957 = vmul.f32 %v956, %v955
  %v958 = vmul.f32 %v957, %v956
  %v959 = vmul.f32 0.5, %v958
  %v960 = vsub.f32 1.5, %v959
  %v961 = vmul.f32 %v956, %v960
  %vm962 = vweird.f32 %v955
  %vm963 = vweird.f32 %v956
  %vm964 = vmor %vm962, %vm963
  %v965 = vsel %vm964, %v956, %v961
  %v966 = vmul.f32 %v954, %v965
  %v967 = vmul.f32 %v949, %v966
  %v969 = vrot.slane %v967, 7
  %v971 = vsub.f32 %v954, %v969
  %v972 = vperm.slane %v966, 0
  %v973 = vmul.f32 %v911, %v972
  %v974 = vmul.f32 %v913, %v972
  %v975 = vperm.slane %v971, 1
  %v976 = vadd.f32 %v973, %v975
  %v977 = vadd.f32 %v974, %v975
  %v978 = vmax.f32 %v976, 0.0
  %v979 = vmax.f32 %v977, 0.0
  %980 = vst [vmem:[%s4] sm:$0xff] %v978
  %981 = vst [vmem:[%s4 + $0x8] sm:$0xff] %v979
  // Predicated region
  $region18: #{cnn_jepa_predictor.1} parent=0 // pred_check
    _
  $region19: #{cnn_jepa_predictor.1} parent=0 // pred_check_branch
    %983 = sbr.rel (0) target = $region21
  $region20: #{cnn_jepa_predictor.1} parent=0 // pred_region
    _
  $region21: #{cnn_jepa_predictor.1} parent=0 // pred_fallthru
    _
  // Predicated region
  $region22: #{cnn_jepa_predictor.1} parent=0 // pred_check
    _
  $region23: #{cnn_jepa_predictor.1} parent=0 // pred_check_branch
    %985 = sbr.rel (0) target = $region25
  $region24: #{cnn_jepa_predictor.1} parent=0 // pred_region
    _
  $region25: #{cnn_jepa_predictor.1} parent=0 // pred_fallthru
    _

</llo_original>
